<compile_context>
chip_gen: v7x
topology: tpu7x:2x2x1
jax: 0.10.0
libtpu: 0.0.40
codegen_flags: <defaults>
</compile_context>

<pallas_src>
import jax
import jax.numpy as jnp
from jax.experimental import pallas as pl
from jax.experimental.pallas import tpu as pltpu


def _spatial_attention_kernel(x_ref, w_ref, out_ref, pad_ref):
    # x_ref:   (1, C, H, W)  one batch element, NCHW (W on the lane axis)
    # w_ref:   (2*7*7,) f32 in SMEM -- conv1.weight[0] flattened (c, kh, kw)
    # out_ref: (1, 1, H, W)
    # pad_ref: (2, H + 6, W + 6) f32 VMEM scratch (zero-padded avg/max planes)
    C = x_ref.shape[1]
    H = out_ref.shape[2]
    W = out_ref.shape[3]
    K = 7
    P = 3  # padding = 3 for kernel_size = 7

    x = x_ref[0]                                   # (C, H, W)

    # Channel pooling: reduction over the leading (untiled) dim is just C-1
    # elementwise adds / maxes per vreg.
    avg = jnp.mean(x, axis=0)                      # (H, W)
    mx = jnp.max(x, axis=0)                        # (H, W)

    # Zero ONLY the halo ring; the interior is overwritten right below.
    # Re-done every grid step so correctness does not depend on which core
    # ran step 0 when the batch axis is sharded (v7x, 2 TCs).
    zero_rows = jnp.zeros((2, P, W + 2 * P), jnp.float32)
    zero_cols = jnp.zeros((2, H, P), jnp.float32)
    pad_ref[:, 0:P, :] = zero_rows
    pad_ref[:, H + P:, :] = zero_rows
    pad_ref[:, P:P + H, 0:P] = zero_cols
    pad_ref[:, P:P + H, W + P:] = zero_cols

    pad_ref[0, P:P + H, P:P + W] = avg
    pad_ref[1, P:P + H, P:P + W] = mx

    # 7x7 conv, 2 -> 1 channels, no bias.
    # 14 row-band loads; the kw shifts are static value slices of each band;
    # weights are scalar SMEM reads broadcast by the VPU.
    acc = jnp.zeros((H, W), jnp.float32)
    for c in range(2):
        for kh in range(K):
            band = pad_ref[c, kh:kh + H, :]        # (H, W + 6)
            for kw in range(K):
                w = w_ref[c * K * K + kh * K + kw]
                acc = acc + band[:, kw:kw + W] * w

    out_ref[0, 0] = jax.nn.sigmoid(acc)


def spatial_attention(x_nchw, weight):
    """x_nchw: (N, C, H, W) float32. weight: (2, 7, 7) float32 (= conv1.weight[0])."""
    N, C, H, W = x_nchw.shape
    x_nchw = x_nchw.astype(jnp.float32)
    w_flat = weight.astype(jnp.float32).reshape(-1)          # (98,)

    return pl.pallas_call(
        _spatial_attention_kernel,
        out_shape=jax.ShapeDtypeStruct((N, 1, H, W), jnp.float32),
        grid_spec=pltpu.PrefetchScalarGridSpec(
            num_scalar_prefetch=0,
            grid=(N,),
            in_specs=[
                pl.BlockSpec((1, C, H, W), lambda n: (n, 0, 0, 0)),        # x
                pl.BlockSpec(memory_space=pltpu.MemorySpace.SMEM),         # weights
            ],
            out_specs=pl.BlockSpec((1, 1, H, W), lambda n: (n, 0, 0, 0)),
            scratch_shapes=[
                pltpu.VMEM((2, H + 2 * 3, W + 2 * 3), jnp.float32),        # padded avg/max
            ],
        ),
        compiler_params=pltpu.CompilerParams(
            dimension_semantics=("parallel",)),   # batch elements independent (v7x: 2 TCs)
    )(x_nchw, w_flat)


def reference(x, weight):
    """Pure-JAX reference matching the PyTorch module semantics."""
    avg = jnp.mean(x, axis=1, keepdims=True)
    mx = jnp.max(x, axis=1, keepdims=True)
    s = jnp.concatenate([avg, mx], axis=1)                    # (N, 2, H, W)
    y = jax.lax.conv_general_dilated(
        s, weight[None], window_strides=(1, 1), padding=((3, 3), (3, 3)),
        dimension_numbers=('NCHW', 'OIHW', 'NCHW'))
    return jax.nn.sigmoid(y)


if __name__ == "__main__":
    B, C, H, W = 2, 4, 16, 16
    key = jax.random.PRNGKey(0)
    kx, kw = jax.random.split(key)
    x = jax.random.normal(kx, (B, C, H, W), jnp.float32)
    weight = jax.random.normal(kw, (2, 7, 7), jnp.float32) * 0.1   # Conv2d(2,1,7) weight[0]

    out = spatial_attention(x, weight)
    out = jax.block_until_ready(out)

    ref = reference(x, weight)
    assert out.shape == ref.shape == (B, 1, H, W)
    assert bool(jnp.allclose(out, ref, atol=1e-3, rtol=1e-3)), "mismatch vs reference"

    print("KERNEL_OK")
</pallas_src>

<mosaic_0001>
module attributes {stable_mosaic.version = 11 : i64} {
  func.func @_spatial_attention_kernel(%arg0: i32, %arg1: memref<1x4x16x16xf32, #tpu.memory_space<vmem>>, %arg2: memref<98xf32, #tpu.memory_space<smem>>, %arg3: memref<1x1x16x16xf32, #tpu.memory_space<vmem>>, %arg4: memref<2x22x22xf32, #tpu.memory_space<vmem>>) attributes {dimension_semantics = [#tpu.dimension_semantics<parallel>], iteration_bounds = array<i64: 2>, scalar_prefetch = 0 : i64, scratch_operands = 1 : i64, tpu.core_type = #tpu.core_type<tc>, window_params = [{transform_indices = @transform_0, window_bounds = array<i64: 1, 4, 16, 16>}, {transform_indices = @transform_1, window_bounds = array<i64: 98>}, {transform_indices = @transform_2, window_bounds = array<i64: 1, 1, 16, 16>}]} {
    %c0 = arith.constant 0 : index
    %c0_0 = arith.constant 0 : index
    %c0_1 = arith.constant 0 : index
    %c0_2 = arith.constant 0 : index
    %0 = vector.load %arg1[%c0, %c0_0, %c0_1, %c0_2] : memref<1x4x16x16xf32, #tpu.memory_space<vmem>>, vector<1x4x16x16xf32>
    %1 = vector.shape_cast %0 : vector<1x4x16x16xf32> to vector<4x16x16xf32>
    %cst = arith.constant dense<0.000000e+00> : vector<16x16xf32>
    %2 = vector.multi_reduction <add>, %1, %cst [0] : vector<4x16x16xf32> to vector<16x16xf32>
    %cst_3 = arith.constant 4.000000e+00 : f32
    %3 = vector.broadcast %cst_3 : f32 to vector<16x16xf32>
    %4 = arith.divf %2, %3 : vector<16x16xf32>
    %cst_4 = arith.constant dense<0xFF800000> : vector<16x16xf32>
    %5 = vector.multi_reduction <maximumf>, %1, %cst_4 [0] : vector<4x16x16xf32> to vector<16x16xf32>
    %cst_5 = arith.constant 0.000000e+00 : f32
    %6 = vector.broadcast %cst_5 : f32 to vector<2x3x22xf32>
    %cst_6 = arith.constant 0.000000e+00 : f32
    %7 = vector.broadcast %cst_6 : f32 to vector<2x16x3xf32>
    %c0_7 = arith.constant 0 : index
    %c0_8 = arith.constant 0 : index
    %c0_9 = arith.constant 0 : index
    %8 = vector.load %arg4[%c0_7, %c0_8, %c0_9] : memref<2x22x22xf32, #tpu.memory_space<vmem>>, vector<2x3x22xf32>
    tpu.vector_store %arg4[%c0_7, %c0_8, %c0_9], %6 {strides = array<i32>} : memref<2x22x22xf32, #tpu.memory_space<vmem>>, vector<2x3x22xf32>,
    %c0_10 = arith.constant 0 : index
    %c19 = arith.constant 19 : index
    %c0_11 = arith.constant 0 : index
    %9 = vector.load %arg4[%c0_10, %c19, %c0_11] : memref<2x22x22xf32, #tpu.memory_space<vmem>>, vector<2x3x22xf32>
    tpu.vector_store %arg4[%c0_10, %c19, %c0_11], %6 {strides = array<i32>} : memref<2x22x22xf32, #tpu.memory_space<vmem>>, vector<2x3x22xf32>,
    %c0_12 = arith.constant 0 : index
    %c3 = arith.constant 3 : index
    %c0_13 = arith.constant 0 : index
    %10 = vector.load %arg4[%c0_12, %c3, %c0_13] : memref<2x22x22xf32, #tpu.memory_space<vmem>>, vector<2x16x3xf32>
    tpu.vector_store %arg4[%c0_12, %c3, %c0_13], %7 {strides = array<i32>} : memref<2x22x22xf32, #tpu.memory_space<vmem>>, vector<2x16x3xf32>,
    %c0_14 = arith.constant 0 : index
    %c3_15 = arith.constant 3 : index
    %c19_16 = arith.constant 19 : index
    %11 = vector.load %arg4[%c0_14, %c3_15, %c19_16] : memref<2x22x22xf32, #tpu.memory_space<vmem>>, vector<2x16x3xf32>
    tpu.vector_store %arg4[%c0_14, %c3_15, %c19_16], %7 {strides = array<i32>} : memref<2x22x22xf32, #tpu.memory_space<vmem>>, vector<2x16x3xf32>,
    %c0_17 = arith.constant 0 : index
    %c3_18 = arith.constant 3 : index
    %c3_19 = arith.constant 3 : index
    %12 = vector.load %arg4[%c0_17, %c3_18, %c3_19] : memref<2x22x22xf32, #tpu.memory_space<vmem>>, vector<1x16x16xf32>
    %13 = vector.shape_cast %12 : vector<1x16x16xf32> to vector<16x16xf32>
    %14 = vector.shape_cast %4 : vector<16x16xf32> to vector<1x16x16xf32>
    tpu.vector_store %arg4[%c0_17, %c3_18, %c3_19], %14 {strides = array<i32>} : memref<2x22x22xf32, #tpu.memory_space<vmem>>, vector<1x16x16xf32>,
    %c1 = arith.constant 1 : index
    %c3_20 = arith.constant 3 : index
    %c3_21 = arith.constant 3 : index
    %15 = vector.load %arg4[%c1, %c3_20, %c3_21] : memref<2x22x22xf32, #tpu.memory_space<vmem>>, vector<1x16x16xf32>
    %16 = vector.shape_cast %15 : vector<1x16x16xf32> to vector<16x16xf32>
    %17 = vector.shape_cast %5 : vector<16x16xf32> to vector<1x16x16xf32>
    tpu.vector_store %arg4[%c1, %c3_20, %c3_21], %17 {strides = array<i32>} : memref<2x22x22xf32, #tpu.memory_space<vmem>>, vector<1x16x16xf32>,
    %cst_22 = arith.constant 0.000000e+00 : f32
    %18 = vector.broadcast %cst_22 : f32 to vector<16x16xf32>
    %c0_23 = arith.constant 0 : index
    %c0_24 = arith.constant 0 : index
    %c0_25 = arith.constant 0 : index
    %19 = vector.load %arg4[%c0_23, %c0_24, %c0_25] : memref<2x22x22xf32, #tpu.memory_space<vmem>>, vector<1x16x22xf32>
    %20 = vector.shape_cast %19 : vector<1x16x22xf32> to vector<16x22xf32>
    %c0_26 = arith.constant 0 : index
    %21 = memref.load %arg2[%c0_26] : memref<98xf32, #tpu.memory_space<smem>>
    %22 = vector.extract_strided_slice %20 {offsets = [0, 0], sizes = [16, 16], strides = [1, 1]} : vector<16x22xf32> to vector<16x16xf32>
    %23 = vector.broadcast %21 : f32 to vector<16x16xf32>
    %24 = arith.mulf %22, %23 : vector<16x16xf32>
    %25 = arith.addf %18, %24 : vector<16x16xf32>
    %c1_27 = arith.constant 1 : index
    %26 = memref.load %arg2[%c1_27] : memref<98xf32, #tpu.memory_space<smem>>
    %27 = vector.extract_strided_slice %20 {offsets = [0, 1], sizes = [16, 16], strides = [1, 1]} : vector<16x22xf32> to vector<16x16xf32>
    %28 = vector.broadcast %26 : f32 to vector<16x16xf32>
    %29 = arith.mulf %27, %28 : vector<16x16xf32>
    %30 = arith.addf %25, %29 : vector<16x16xf32>
    %c2 = arith.constant 2 : index
    %31 = memref.load %arg2[%c2] : memref<98xf32, #tpu.memory_space<smem>>
    %32 = vector.extract_strided_slice %20 {offsets = [0, 2], sizes = [16, 16], strides = [1, 1]} : vector<16x22xf32> to vector<16x16xf32>
    %33 = vector.broadcast %31 : f32 to vector<16x16xf32>
    %34 = arith.mulf %32, %33 : vector<16x16xf32>
    %35 = arith.addf %30, %34 : vector<16x16xf32>
    %c3_28 = arith.constant 3 : index
    %36 = memref.load %arg2[%c3_28] : memref<98xf32, #tpu.memory_space<smem>>
    %37 = vector.extract_strided_slice %20 {offsets = [0, 3], sizes = [16, 16], strides = [1, 1]} : vector<16x22xf32> to vector<16x16xf32>
    %38 = vector.broadcast %36 : f32 to vector<16x16xf32>
    %39 = arith.mulf %37, %38 : vector<16x16xf32>
    %40 = arith.addf %35, %39 : vector<16x16xf32>
    %c4 = arith.constant 4 : index
    %41 = memref.load %arg2[%c4] : memref<98xf32, #tpu.memory_space<smem>>
    %42 = vector.extract_strided_slice %20 {offsets = [0, 4], sizes = [16, 16], strides = [1, 1]} : vector<16x22xf32> to vector<16x16xf32>
    %43 = vector.broadcast %41 : f32 to vector<16x16xf32>
    %44 = arith.mulf %42, %43 : vector<16x16xf32>
    %45 = arith.addf %40, %44 : vector<16x16xf32>
    %c5 = arith.constant 5 : index
    %46 = memref.load %arg2[%c5] : memref<98xf32, #tpu.memory_space<smem>>
    %47 = vector.extract_strided_slice %20 {offsets = [0, 5], sizes = [16, 16], strides = [1, 1]} : vector<16x22xf32> to vector<16x16xf32>
    %48 = vector.broadcast %46 : f32 to vector<16x16xf32>
    %49 = arith.mulf %47, %48 : vector<16x16xf32>
    %50 = arith.addf %45, %49 : vector<16x16xf32>
    %c6 = arith.constant 6 : index
    %51 = memref.load %arg2[%c6] : memref<98xf32, #tpu.memory_space<smem>>
    %52 = vector.extract_strided_slice %20 {offsets = [0, 6], sizes = [16, 16], strides = [1, 1]} : vector<16x22xf32> to vector<16x16xf32>
    %53 = vector.broadcast %51 : f32 to vector<16x16xf32>
    %54 = arith.mulf %52, %53 : vector<16x16xf32>
    %55 = arith.addf %50, %54 : vector<16x16xf32>
    %c0_29 = arith.constant 0 : index
    %c1_30 = arith.constant 1 : index
    %c0_31 = arith.constant 0 : index
    %56 = vector.load %arg4[%c0_29, %c1_30, %c0_31] : memref<2x22x22xf32, #tpu.memory_space<vmem>>, vector<1x16x22xf32>
    %57 = vector.shape_cast %56 : vector<1x16x22xf32> to vector<16x22xf32>
    %c7 = arith.constant 7 : index
    %58 = memref.load %arg2[%c7] : memref<98xf32, #tpu.memory_space<smem>>
    %59 = vector.extract_strided_slice %57 {offsets = [0, 0], sizes = [16, 16], strides = [1, 1]} : vector<16x22xf32> to vector<16x16xf32>
    %60 = vector.broadcast %58 : f32 to vector<16x16xf32>
    %61 = arith.mulf %59, %60 : vector<16x16xf32>
    %62 = arith.addf %55, %61 : vector<16x16xf32>
    %c8 = arith.constant 8 : index
    %63 = memref.load %arg2[%c8] : memref<98xf32, #tpu.memory_space<smem>>
    %64 = vector.extract_strided_slice %57 {offsets = [0, 1], sizes = [16, 16], strides = [1, 1]} : vector<16x22xf32> to vector<16x16xf32>
    %65 = vector.broadcast %63 : f32 to vector<16x16xf32>
    %66 = arith.mulf %64, %65 : vector<16x16xf32>
    %67 = arith.addf %62, %66 : vector<16x16xf32>
    %c9 = arith.constant 9 : index
    %68 = memref.load %arg2[%c9] : memref<98xf32, #tpu.memory_space<smem>>
    %69 = vector.extract_strided_slice %57 {offsets = [0, 2], sizes = [16, 16], strides = [1, 1]} : vector<16x22xf32> to vector<16x16xf32>
    %70 = vector.broadcast %68 : f32 to vector<16x16xf32>
    %71 = arith.mulf %69, %70 : vector<16x16xf32>
    %72 = arith.addf %67, %71 : vector<16x16xf32>
    %c10 = arith.constant 10 : index
    %73 = memref.load %arg2[%c10] : memref<98xf32, #tpu.memory_space<smem>>
    %74 = vector.extract_strided_slice %57 {offsets = [0, 3], sizes = [16, 16], strides = [1, 1]} : vector<16x22xf32> to vector<16x16xf32>
    %75 = vector.broadcast %73 : f32 to vector<16x16xf32>
    %76 = arith.mulf %74, %75 : vector<16x16xf32>
    %77 = arith.addf %72, %76 : vector<16x16xf32>
    %c11 = arith.constant 11 : index
    %78 = memref.load %arg2[%c11] : memref<98xf32, #tpu.memory_space<smem>>
    %79 = vector.extract_strided_slice %57 {offsets = [0, 4], sizes = [16, 16], strides = [1, 1]} : vector<16x22xf32> to vector<16x16xf32>
    %80 = vector.broadcast %78 : f32 to vector<16x16xf32>
    %81 = arith.mulf %79, %80 : vector<16x16xf32>
    %82 = arith.addf %77, %81 : vector<16x16xf32>
    %c12 = arith.constant 12 : index
    %83 = memref.load %arg2[%c12] : memref<98xf32, #tpu.memory_space<smem>>
    %84 = vector.extract_strided_slice %57 {offsets = [0, 5], sizes = [16, 16], strides = [1, 1]} : vector<16x22xf32> to vector<16x16xf32>
    %85 = vector.broadcast %83 : f32 to vector<16x16xf32>
    %86 = arith.mulf %84, %85 : vector<16x16xf32>
    %87 = arith.addf %82, %86 : vector<16x16xf32>
    %c13 = arith.constant 13 : index
    %88 = memref.load %arg2[%c13] : memref<98xf32, #tpu.memory_space<smem>>
    %89 = vector.extract_strided_slice %57 {offsets = [0, 6], sizes = [16, 16], strides = [1, 1]} : vector<16x22xf32> to vector<16x16xf32>
    %90 = vector.broadcast %88 : f32 to vector<16x16xf32>
    %91 = arith.mulf %89, %90 : vector<16x16xf32>
    %92 = arith.addf %87, %91 : vector<16x16xf32>
    %c0_32 = arith.constant 0 : index
    %c2_33 = arith.constant 2 : index
    %c0_34 = arith.constant 0 : index
    %93 = vector.load %arg4[%c0_32, %c2_33, %c0_34] : memref<2x22x22xf32, #tpu.memory_space<vmem>>, vector<1x16x22xf32>
    %94 = vector.shape_cast %93 : vector<1x16x22xf32> to vector<16x22xf32>
    %c14 = arith.constant 14 : index
    %95 = memref.load %arg2[%c14] : memref<98xf32, #tpu.memory_space<smem>>
    %96 = vector.extract_strided_slice %94 {offsets = [0, 0], sizes = [16, 16], strides = [1, 1]} : vector<16x22xf32> to vector<16x16xf32>
    %97 = vector.broadcast %95 : f32 to vector<16x16xf32>
    %98 = arith.mulf %96, %97 : vector<16x16xf32>
    %99 = arith.addf %92, %98 : vector<16x16xf32>
    %c15 = arith.constant 15 : index
    %100 = memref.load %arg2[%c15] : memref<98xf32, #tpu.memory_space<smem>>
    %101 = vector.extract_strided_slice %94 {offsets = [0, 1], sizes = [16, 16], strides = [1, 1]} : vector<16x22xf32> to vector<16x16xf32>
    %102 = vector.broadcast %100 : f32 to vector<16x16xf32>
    %103 = arith.mulf %101, %102 : vector<16x16xf32>
    %104 = arith.addf %99, %103 : vector<16x16xf32>
    %c16 = arith.constant 16 : index
    %105 = memref.load %arg2[%c16] : memref<98xf32, #tpu.memory_space<smem>>
    %106 = vector.extract_strided_slice %94 {offsets = [0, 2], sizes = [16, 16], strides = [1, 1]} : vector<16x22xf32> to vector<16x16xf32>
    %107 = vector.broadcast %105 : f32 to vector<16x16xf32>
    %108 = arith.mulf %106, %107 : vector<16x16xf32>
    %109 = arith.addf %104, %108 : vector<16x16xf32>
    %c17 = arith.constant 17 : index
    %110 = memref.load %arg2[%c17] : memref<98xf32, #tpu.memory_space<smem>>
    %111 = vector.extract_strided_slice %94 {offsets = [0, 3], sizes = [16, 16], strides = [1, 1]} : vector<16x22xf32> to vector<16x16xf32>
    %112 = vector.broadcast %110 : f32 to vector<16x16xf32>
    %113 = arith.mulf %111, %112 : vector<16x16xf32>
    %114 = arith.addf %109, %113 : vector<16x16xf32>
    %c18 = arith.constant 18 : index
    %115 = memref.load %arg2[%c18] : memref<98xf32, #tpu.memory_space<smem>>
    %116 = vector.extract_strided_slice %94 {offsets = [0, 4], sizes = [16, 16], strides = [1, 1]} : vector<16x22xf32> to vector<16x16xf32>
    %117 = vector.broadcast %115 : f32 to vector<16x16xf32>
    %118 = arith.mulf %116, %117 : vector<16x16xf32>
    %119 = arith.addf %114, %118 : vector<16x16xf32>
    %c19_35 = arith.constant 19 : index
    %120 = memref.load %arg2[%c19_35] : memref<98xf32, #tpu.memory_space<smem>>
    %121 = vector.extract_strided_slice %94 {offsets = [0, 5], sizes = [16, 16], strides = [1, 1]} : vector<16x22xf32> to vector<16x16xf32>
    %122 = vector.broadcast %120 : f32 to vector<16x16xf32>
    %123 = arith.mulf %121, %122 : vector<16x16xf32>
    %124 = arith.addf %119, %123 : vector<16x16xf32>
    %c20 = arith.constant 20 : index
    %125 = memref.load %arg2[%c20] : memref<98xf32, #tpu.memory_space<smem>>
    %126 = vector.extract_strided_slice %94 {offsets = [0, 6], sizes = [16, 16], strides = [1, 1]} : vector<16x22xf32> to vector<16x16xf32>
    %127 = vector.broadcast %125 : f32 to vector<16x16xf32>
    %128 = arith.mulf %126, %127 : vector<16x16xf32>
    %129 = arith.addf %124, %128 : vector<16x16xf32>
    %c0_36 = arith.constant 0 : index
    %c3_37 = arith.constant 3 : index
    %c0_38 = arith.constant 0 : index
    %130 = vector.load %arg4[%c0_36, %c3_37, %c0_38] : memref<2x22x22xf32, #tpu.memory_space<vmem>>, vector<1x16x22xf32>
    %131 = vector.shape_cast %130 : vector<1x16x22xf32> to vector<16x22xf32>
    %c21 = arith.constant 21 : index
    %132 = memref.load %arg2[%c21] : memref<98xf32, #tpu.memory_space<smem>>
    %133 = vector.extract_strided_slice %131 {offsets = [0, 0], sizes = [16, 16], strides = [1, 1]} : vector<16x22xf32> to vector<16x16xf32>
    %134 = vector.broadcast %132 : f32 to vector<16x16xf32>
    %135 = arith.mulf %133, %134 : vector<16x16xf32>
    %136 = arith.addf %129, %135 : vector<16x16xf32>
    %c22 = arith.constant 22 : index
    %137 = memref.load %arg2[%c22] : memref<98xf32, #tpu.memory_space<smem>>
    %138 = vector.extract_strided_slice %131 {offsets = [0, 1], sizes = [16, 16], strides = [1, 1]} : vector<16x22xf32> to vector<16x16xf32>
    %139 = vector.broadcast %137 : f32 to vector<16x16xf32>
    %140 = arith.mulf %138, %139 : vector<16x16xf32>
    %141 = arith.addf %136, %140 : vector<16x16xf32>
    %c23 = arith.constant 23 : index
    %142 = memref.load %arg2[%c23] : memref<98xf32, #tpu.memory_space<smem>>
    %143 = vector.extract_strided_slice %131 {offsets = [0, 2], sizes = [16, 16], strides = [1, 1]} : vector<16x22xf32> to vector<16x16xf32>
    %144 = vector.broadcast %142 : f32 to vector<16x16xf32>
    %145 = arith.mulf %143, %144 : vector<16x16xf32>
    %146 = arith.addf %141, %145 : vector<16x16xf32>
    %c24 = arith.constant 24 : index
    %147 = memref.load %arg2[%c24] : memref<98xf32, #tpu.memory_space<smem>>
    %148 = vector.extract_strided_slice %131 {offsets = [0, 3], sizes = [16, 16], strides = [1, 1]} : vector<16x22xf32> to vector<16x16xf32>
    %149 = vector.broadcast %147 : f32 to vector<16x16xf32>
    %150 = arith.mulf %148, %149 : vector<16x16xf32>
    %151 = arith.addf %146, %150 : vector<16x16xf32>
    %c25 = arith.constant 25 : index
    %152 = memref.load %arg2[%c25] : memref<98xf32, #tpu.memory_space<smem>>
    %153 = vector.extract_strided_slice %131 {offsets = [0, 4], sizes = [16, 16], strides = [1, 1]} : vector<16x22xf32> to vector<16x16xf32>
    %154 = vector.broadcast %152 : f32 to vector<16x16xf32>
    %155 = arith.mulf %153, %154 : vector<16x16xf32>
    %156 = arith.addf %151, %155 : vector<16x16xf32>
    %c26 = arith.constant 26 : index
    %157 = memref.load %arg2[%c26] : memref<98xf32, #tpu.memory_space<smem>>
    %158 = vector.extract_strided_slice %131 {offsets = [0, 5], sizes = [16, 16], strides = [1, 1]} : vector<16x22xf32> to vector<16x16xf32>
    %159 = vector.broadcast %157 : f32 to vector<16x16xf32>
    %160 = arith.mulf %158, %159 : vector<16x16xf32>
    %161 = arith.addf %156, %160 : vector<16x16xf32>
    %c27 = arith.constant 27 : index
    %162 = memref.load %arg2[%c27] : memref<98xf32, #tpu.memory_space<smem>>
    %163 = vector.extract_strided_slice %131 {offsets = [0, 6], sizes = [16, 16], strides = [1, 1]} : vector<16x22xf32> to vector<16x16xf32>
    %164 = vector.broadcast %162 : f32 to vector<16x16xf32>
    %165 = arith.mulf %163, %164 : vector<16x16xf32>
    %166 = arith.addf %161, %165 : vector<16x16xf32>
    %c0_39 = arith.constant 0 : index
    %c4_40 = arith.constant 4 : index
    %c0_41 = arith.constant 0 : index
    %167 = vector.load %arg4[%c0_39, %c4_40, %c0_41] : memref<2x22x22xf32, #tpu.memory_space<vmem>>, vector<1x16x22xf32>
    %168 = vector.shape_cast %167 : vector<1x16x22xf32> to vector<16x22xf32>
    %c28 = arith.constant 28 : index
    %169 = memref.load %arg2[%c28] : memref<98xf32, #tpu.memory_space<smem>>
    %170 = vector.extract_strided_slice %168 {offsets = [0, 0], sizes = [16, 16], strides = [1, 1]} : vector<16x22xf32> to vector<16x16xf32>
    %171 = vector.broadcast %169 : f32 to vector<16x16xf32>
    %172 = arith.mulf %170, %171 : vector<16x16xf32>
    %173 = arith.addf %166, %172 : vector<16x16xf32>
    %c29 = arith.constant 29 : index
    %174 = memref.load %arg2[%c29] : memref<98xf32, #tpu.memory_space<smem>>
    %175 = vector.extract_strided_slice %168 {offsets = [0, 1], sizes = [16, 16], strides = [1, 1]} : vector<16x22xf32> to vector<16x16xf32>
    %176 = vector.broadcast %174 : f32 to vector<16x16xf32>
    %177 = arith.mulf %175, %176 : vector<16x16xf32>
    %178 = arith.addf %173, %177 : vector<16x16xf32>
    %c30 = arith.constant 30 : index
    %179 = memref.load %arg2[%c30] : memref<98xf32, #tpu.memory_space<smem>>
    %180 = vector.extract_strided_slice %168 {offsets = [0, 2], sizes = [16, 16], strides = [1, 1]} : vector<16x22xf32> to vector<16x16xf32>
    %181 = vector.broadcast %179 : f32 to vector<16x16xf32>
    %182 = arith.mulf %180, %181 : vector<16x16xf32>
    %183 = arith.addf %178, %182 : vector<16x16xf32>
    %c31 = arith.constant 31 : index
    %184 = memref.load %arg2[%c31] : memref<98xf32, #tpu.memory_space<smem>>
    %185 = vector.extract_strided_slice %168 {offsets = [0, 3], sizes = [16, 16], strides = [1, 1]} : vector<16x22xf32> to vector<16x16xf32>
    %186 = vector.broadcast %184 : f32 to vector<16x16xf32>
    %187 = arith.mulf %185, %186 : vector<16x16xf32>
    %188 = arith.addf %183, %187 : vector<16x16xf32>
    %c32 = arith.constant 32 : index
    %189 = memref.load %arg2[%c32] : memref<98xf32, #tpu.memory_space<smem>>
    %190 = vector.extract_strided_slice %168 {offsets = [0, 4], sizes = [16, 16], strides = [1, 1]} : vector<16x22xf32> to vector<16x16xf32>
    %191 = vector.broadcast %189 : f32 to vector<16x16xf32>
    %192 = arith.mulf %190, %191 : vector<16x16xf32>
    %193 = arith.addf %188, %192 : vector<16x16xf32>
    %c33 = arith.constant 33 : index
    %194 = memref.load %arg2[%c33] : memref<98xf32, #tpu.memory_space<smem>>
    %195 = vector.extract_strided_slice %168 {offsets = [0, 5], sizes = [16, 16], strides = [1, 1]} : vector<16x22xf32> to vector<16x16xf32>
    %196 = vector.broadcast %194 : f32 to vector<16x16xf32>
    %197 = arith.mulf %195, %196 : vector<16x16xf32>
    %198 = arith.addf %193, %197 : vector<16x16xf32>
    %c34 = arith.constant 34 : index
    %199 = memref.load %arg2[%c34] : memref<98xf32, #tpu.memory_space<smem>>
    %200 = vector.extract_strided_slice %168 {offsets = [0, 6], sizes = [16, 16], strides = [1, 1]} : vector<16x22xf32> to vector<16x16xf32>
    %201 = vector.broadcast %199 : f32 to vector<16x16xf32>
    %202 = arith.mulf %200, %201 : vector<16x16xf32>
    %203 = arith.addf %198, %202 : vector<16x16xf32>
    %c0_42 = arith.constant 0 : index
    %c5_43 = arith.constant 5 : index
    %c0_44 = arith.constant 0 : index
    %204 = vector.load %arg4[%c0_42, %c5_43, %c0_44] : memref<2x22x22xf32, #tpu.memory_space<vmem>>, vector<1x16x22xf32>
    %205 = vector.shape_cast %204 : vector<1x16x22xf32> to vector<16x22xf32>
    %c35 = arith.constant 35 : index
    %206 = memref.load %arg2[%c35] : memref<98xf32, #tpu.memory_space<smem>>
    %207 = vector.extract_strided_slice %205 {offsets = [0, 0], sizes = [16, 16], strides = [1, 1]} : vector<16x22xf32> to vector<16x16xf32>
    %208 = vector.broadcast %206 : f32 to vector<16x16xf32>
    %209 = arith.mulf %207, %208 : vector<16x16xf32>
    %210 = arith.addf %203, %209 : vector<16x16xf32>
    %c36 = arith.constant 36 : index
    %211 = memref.load %arg2[%c36] : memref<98xf32, #tpu.memory_space<smem>>
    %212 = vector.extract_strided_slice %205 {offsets = [0, 1], sizes = [16, 16], strides = [1, 1]} : vector<16x22xf32> to vector<16x16xf32>
    %213 = vector.broadcast %211 : f32 to vector<16x16xf32>
    %214 = arith.mulf %212, %213 : vector<16x16xf32>
    %215 = arith.addf %210, %214 : vector<16x16xf32>
    %c37 = arith.constant 37 : index
    %216 = memref.load %arg2[%c37] : memref<98xf32, #tpu.memory_space<smem>>
    %217 = vector.extract_strided_slice %205 {offsets = [0, 2], sizes = [16, 16], strides = [1, 1]} : vector<16x22xf32> to vector<16x16xf32>
    %218 = vector.broadcast %216 : f32 to vector<16x16xf32>
    %219 = arith.mulf %217, %218 : vector<16x16xf32>
    %220 = arith.addf %215, %219 : vector<16x16xf32>
    %c38 = arith.constant 38 : index
    %221 = memref.load %arg2[%c38] : memref<98xf32, #tpu.memory_space<smem>>
    %222 = vector.extract_strided_slice %205 {offsets = [0, 3], sizes = [16, 16], strides = [1, 1]} : vector<16x22xf32> to vector<16x16xf32>
    %223 = vector.broadcast %221 : f32 to vector<16x16xf32>
    %224 = arith.mulf %222, %223 : vector<16x16xf32>
    %225 = arith.addf %220, %224 : vector<16x16xf32>
    %c39 = arith.constant 39 : index
    %226 = memref.load %arg2[%c39] : memref<98xf32, #tpu.memory_space<smem>>
    %227 = vector.extract_strided_slice %205 {offsets = [0, 4], sizes = [16, 16], strides = [1, 1]} : vector<16x22xf32> to vector<16x16xf32>
    %228 = vector.broadcast %226 : f32 to vector<16x16xf32>
    %229 = arith.mulf %227, %228 : vector<16x16xf32>
    %230 = arith.addf %225, %229 : vector<16x16xf32>
    %c40 = arith.constant 40 : index
    %231 = memref.load %arg2[%c40] : memref<98xf32, #tpu.memory_space<smem>>
    %232 = vector.extract_strided_slice %205 {offsets = [0, 5], sizes = [16, 16], strides = [1, 1]} : vector<16x22xf32> to vector<16x16xf32>
    %233 = vector.broadcast %231 : f32 to vector<16x16xf32>
    %234 = arith.mulf %232, %233 : vector<16x16xf32>
    %235 = arith.addf %230, %234 : vector<16x16xf32>
    %c41 = arith.constant 41 : index
    %236 = memref.load %arg2[%c41] : memref<98xf32, #tpu.memory_space<smem>>
    %237 = vector.extract_strided_slice %205 {offsets = [0, 6], sizes = [16, 16], strides = [1, 1]} : vector<16x22xf32> to vector<16x16xf32>
    %238 = vector.broadcast %236 : f32 to vector<16x16xf32>
    %239 = arith.mulf %237, %238 : vector<16x16xf32>
    %240 = arith.addf %235, %239 : vector<16x16xf32>
    %c0_45 = arith.constant 0 : index
    %c6_46 = arith.constant 6 : index
    %c0_47 = arith.constant 0 : index
    %241 = vector.load %arg4[%c0_45, %c6_46, %c0_47] : memref<2x22x22xf32, #tpu.memory_space<vmem>>, vector<1x16x22xf32>
    %242 = vector.shape_cast %241 : vector<1x16x22xf32> to vector<16x22xf32>
    %c42 = arith.constant 42 : index
    %243 = memref.load %arg2[%c42] : memref<98xf32, #tpu.memory_space<smem>>
    %244 = vector.extract_strided_slice %242 {offsets = [0, 0], sizes = [16, 16], strides = [1, 1]} : vector<16x22xf32> to vector<16x16xf32>
    %245 = vector.broadcast %243 : f32 to vector<16x16xf32>
    %246 = arith.mulf %244, %245 : vector<16x16xf32>
    %247 = arith.addf %240, %246 : vector<16x16xf32>
    %c43 = arith.constant 43 : index
    %248 = memref.load %arg2[%c43] : memref<98xf32, #tpu.memory_space<smem>>
    %249 = vector.extract_strided_slice %242 {offsets = [0, 1], sizes = [16, 16], strides = [1, 1]} : vector<16x22xf32> to vector<16x16xf32>
    %250 = vector.broadcast %248 : f32 to vector<16x16xf32>
    %251 = arith.mulf %249, %250 : vector<16x16xf32>
    %252 = arith.addf %247, %251 : vector<16x16xf32>
    %c44 = arith.constant 44 : index
    %253 = memref.load %arg2[%c44] : memref<98xf32, #tpu.memory_space<smem>>
    %254 = vector.extract_strided_slice %242 {offsets = [0, 2], sizes = [16, 16], strides = [1, 1]} : vector<16x22xf32> to vector<16x16xf32>
    %255 = vector.broadcast %253 : f32 to vector<16x16xf32>
    %256 = arith.mulf %254, %255 : vector<16x16xf32>
    %257 = arith.addf %252, %256 : vector<16x16xf32>
    %c45 = arith.constant 45 : index
    %258 = memref.load %arg2[%c45] : memref<98xf32, #tpu.memory_space<smem>>
    %259 = vector.extract_strided_slice %242 {offsets = [0, 3], sizes = [16, 16], strides = [1, 1]} : vector<16x22xf32> to vector<16x16xf32>
    %260 = vector.broadcast %258 : f32 to vector<16x16xf32>
    %261 = arith.mulf %259, %260 : vector<16x16xf32>
    %262 = arith.addf %257, %261 : vector<16x16xf32>
    %c46 = arith.constant 46 : index
    %263 = memref.load %arg2[%c46] : memref<98xf32, #tpu.memory_space<smem>>
    %264 = vector.extract_strided_slice %242 {offsets = [0, 4], sizes = [16, 16], strides = [1, 1]} : vector<16x22xf32> to vector<16x16xf32>
    %265 = vector.broadcast %263 : f32 to vector<16x16xf32>
    %266 = arith.mulf %264, %265 : vector<16x16xf32>
    %267 = arith.addf %262, %266 : vector<16x16xf32>
    %c47 = arith.constant 47 : index
    %268 = memref.load %arg2[%c47] : memref<98xf32, #tpu.memory_space<smem>>
    %269 = vector.extract_strided_slice %242 {offsets = [0, 5], sizes = [16, 16], strides = [1, 1]} : vector<16x22xf32> to vector<16x16xf32>
    %270 = vector.broadcast %268 : f32 to vector<16x16xf32>
    %271 = arith.mulf %269, %270 : vector<16x16xf32>
    %272 = arith.addf %267, %271 : vector<16x16xf32>
    %c48 = arith.constant 48 : index
    %273 = memref.load %arg2[%c48] : memref<98xf32, #tpu.memory_space<smem>>
    %274 = vector.extract_strided_slice %242 {offsets = [0, 6], sizes = [16, 16], strides = [1, 1]} : vector<16x22xf32> to vector<16x16xf32>
    %275 = vector.broadcast %273 : f32 to vector<16x16xf32>
    %276 = arith.mulf %274, %275 : vector<16x16xf32>
    %277 = arith.addf %272, %276 : vector<16x16xf32>
    %c1_48 = arith.constant 1 : index
    %c0_49 = arith.constant 0 : index
    %c0_50 = arith.constant 0 : index
    %278 = vector.load %arg4[%c1_48, %c0_49, %c0_50] : memref<2x22x22xf32, #tpu.memory_space<vmem>>, vector<1x16x22xf32>
    %279 = vector.shape_cast %278 : vector<1x16x22xf32> to vector<16x22xf32>
    %c49 = arith.constant 49 : index
    %280 = memref.load %arg2[%c49] : memref<98xf32, #tpu.memory_space<smem>>
    %281 = vector.extract_strided_slice %279 {offsets = [0, 0], sizes = [16, 16], strides = [1, 1]} : vector<16x22xf32> to vector<16x16xf32>
    %282 = vector.broadcast %280 : f32 to vector<16x16xf32>
    %283 = arith.mulf %281, %282 : vector<16x16xf32>
    %284 = arith.addf %277, %283 : vector<16x16xf32>
    %c50 = arith.constant 50 : index
    %285 = memref.load %arg2[%c50] : memref<98xf32, #tpu.memory_space<smem>>
    %286 = vector.extract_strided_slice %279 {offsets = [0, 1], sizes = [16, 16], strides = [1, 1]} : vector<16x22xf32> to vector<16x16xf32>
    %287 = vector.broadcast %285 : f32 to vector<16x16xf32>
    %288 = arith.mulf %286, %287 : vector<16x16xf32>
    %289 = arith.addf %284, %288 : vector<16x16xf32>
    %c51 = arith.constant 51 : index
    %290 = memref.load %arg2[%c51] : memref<98xf32, #tpu.memory_space<smem>>
    %291 = vector.extract_strided_slice %279 {offsets = [0, 2], sizes = [16, 16], strides = [1, 1]} : vector<16x22xf32> to vector<16x16xf32>
    %292 = vector.broadcast %290 : f32 to vector<16x16xf32>
    %293 = arith.mulf %291, %292 : vector<16x16xf32>
    %294 = arith.addf %289, %293 : vector<16x16xf32>
    %c52 = arith.constant 52 : index
    %295 = memref.load %arg2[%c52] : memref<98xf32, #tpu.memory_space<smem>>
    %296 = vector.extract_strided_slice %279 {offsets = [0, 3], sizes = [16, 16], strides = [1, 1]} : vector<16x22xf32> to vector<16x16xf32>
    %297 = vector.broadcast %295 : f32 to vector<16x16xf32>
    %298 = arith.mulf %296, %297 : vector<16x16xf32>
    %299 = arith.addf %294, %298 : vector<16x16xf32>
    %c53 = arith.constant 53 : index
    %300 = memref.load %arg2[%c53] : memref<98xf32, #tpu.memory_space<smem>>
    %301 = vector.extract_strided_slice %279 {offsets = [0, 4], sizes = [16, 16], strides = [1, 1]} : vector<16x22xf32> to vector<16x16xf32>
    %302 = vector.broadcast %300 : f32 to vector<16x16xf32>
    %303 = arith.mulf %301, %302 : vector<16x16xf32>
    %304 = arith.addf %299, %303 : vector<16x16xf32>
    %c54 = arith.constant 54 : index
    %305 = memref.load %arg2[%c54] : memref<98xf32, #tpu.memory_space<smem>>
    %306 = vector.extract_strided_slice %279 {offsets = [0, 5], sizes = [16, 16], strides = [1, 1]} : vector<16x22xf32> to vector<16x16xf32>
    %307 = vector.broadcast %305 : f32 to vector<16x16xf32>
    %308 = arith.mulf %306, %307 : vector<16x16xf32>
    %309 = arith.addf %304, %308 : vector<16x16xf32>
    %c55 = arith.constant 55 : index
    %310 = memref.load %arg2[%c55] : memref<98xf32, #tpu.memory_space<smem>>
    %311 = vector.extract_strided_slice %279 {offsets = [0, 6], sizes = [16, 16], strides = [1, 1]} : vector<16x22xf32> to vector<16x16xf32>
    %312 = vector.broadcast %310 : f32 to vector<16x16xf32>
    %313 = arith.mulf %311, %312 : vector<16x16xf32>
    %314 = arith.addf %309, %313 : vector<16x16xf32>
    %c1_51 = arith.constant 1 : index
    %c1_52 = arith.constant 1 : index
    %c0_53 = arith.constant 0 : index
    %315 = vector.load %arg4[%c1_51, %c1_52, %c0_53] : memref<2x22x22xf32, #tpu.memory_space<vmem>>, vector<1x16x22xf32>
    %316 = vector.shape_cast %315 : vector<1x16x22xf32> to vector<16x22xf32>
    %c56 = arith.constant 56 : index
    %317 = memref.load %arg2[%c56] : memref<98xf32, #tpu.memory_space<smem>>
    %318 = vector.extract_strided_slice %316 {offsets = [0, 0], sizes = [16, 16], strides = [1, 1]} : vector<16x22xf32> to vector<16x16xf32>
    %319 = vector.broadcast %317 : f32 to vector<16x16xf32>
    %320 = arith.mulf %318, %319 : vector<16x16xf32>
    %321 = arith.addf %314, %320 : vector<16x16xf32>
    %c57 = arith.constant 57 : index
    %322 = memref.load %arg2[%c57] : memref<98xf32, #tpu.memory_space<smem>>
    %323 = vector.extract_strided_slice %316 {offsets = [0, 1], sizes = [16, 16], strides = [1, 1]} : vector<16x22xf32> to vector<16x16xf32>
    %324 = vector.broadcast %322 : f32 to vector<16x16xf32>
    %325 = arith.mulf %323, %324 : vector<16x16xf32>
    %326 = arith.addf %321, %325 : vector<16x16xf32>
    %c58 = arith.constant 58 : index
    %327 = memref.load %arg2[%c58] : memref<98xf32, #tpu.memory_space<smem>>
    %328 = vector.extract_strided_slice %316 {offsets = [0, 2], sizes = [16, 16], strides = [1, 1]} : vector<16x22xf32> to vector<16x16xf32>
    %329 = vector.broadcast %327 : f32 to vector<16x16xf32>
    %330 = arith.mulf %328, %329 : vector<16x16xf32>
    %331 = arith.addf %326, %330 : vector<16x16xf32>
    %c59 = arith.constant 59 : index
    %332 = memref.load %arg2[%c59] : memref<98xf32, #tpu.memory_space<smem>>
    %333 = vector.extract_strided_slice %316 {offsets = [0, 3], sizes = [16, 16], strides = [1, 1]} : vector<16x22xf32> to vector<16x16xf32>
    %334 = vector.broadcast %332 : f32 to vector<16x16xf32>
    %335 = arith.mulf %333, %334 : vector<16x16xf32>
    %336 = arith.addf %331, %335 : vector<16x16xf32>
    %c60 = arith.constant 60 : index
    %337 = memref.load %arg2[%c60] : memref<98xf32, #tpu.memory_space<smem>>
    %338 = vector.extract_strided_slice %316 {offsets = [0, 4], sizes = [16, 16], strides = [1, 1]} : vector<16x22xf32> to vector<16x16xf32>
    %339 = vector.broadcast %337 : f32 to vector<16x16xf32>
    %340 = arith.mulf %338, %339 : vector<16x16xf32>
    %341 = arith.addf %336, %340 : vector<16x16xf32>
    %c61 = arith.constant 61 : index
    %342 = memref.load %arg2[%c61] : memref<98xf32, #tpu.memory_space<smem>>
    %343 = vector.extract_strided_slice %316 {offsets = [0, 5], sizes = [16, 16], strides = [1, 1]} : vector<16x22xf32> to vector<16x16xf32>
    %344 = vector.broadcast %342 : f32 to vector<16x16xf32>
    %345 = arith.mulf %343, %344 : vector<16x16xf32>
    %346 = arith.addf %341, %345 : vector<16x16xf32>
    %c62 = arith.constant 62 : index
    %347 = memref.load %arg2[%c62] : memref<98xf32, #tpu.memory_space<smem>>
    %348 = vector.extract_strided_slice %316 {offsets = [0, 6], sizes = [16, 16], strides = [1, 1]} : vector<16x22xf32> to vector<16x16xf32>
    %349 = vector.broadcast %347 : f32 to vector<16x16xf32>
    %350 = arith.mulf %348, %349 : vector<16x16xf32>
    %351 = arith.addf %346, %350 : vector<16x16xf32>
    %c1_54 = arith.constant 1 : index
    %c2_55 = arith.constant 2 : index
    %c0_56 = arith.constant 0 : index
    %352 = vector.load %arg4[%c1_54, %c2_55, %c0_56] : memref<2x22x22xf32, #tpu.memory_space<vmem>>, vector<1x16x22xf32>
    %353 = vector.shape_cast %352 : vector<1x16x22xf32> to vector<16x22xf32>
    %c63 = arith.constant 63 : index
    %354 = memref.load %arg2[%c63] : memref<98xf32, #tpu.memory_space<smem>>
    %355 = vector.extract_strided_slice %353 {offsets = [0, 0], sizes = [16, 16], strides = [1, 1]} : vector<16x22xf32> to vector<16x16xf32>
    %356 = vector.broadcast %354 : f32 to vector<16x16xf32>
    %357 = arith.mulf %355, %356 : vector<16x16xf32>
    %358 = arith.addf %351, %357 : vector<16x16xf32>
    %c64 = arith.constant 64 : index
    %359 = memref.load %arg2[%c64] : memref<98xf32, #tpu.memory_space<smem>>
    %360 = vector.extract_strided_slice %353 {offsets = [0, 1], sizes = [16, 16], strides = [1, 1]} : vector<16x22xf32> to vector<16x16xf32>
    %361 = vector.broadcast %359 : f32 to vector<16x16xf32>
    %362 = arith.mulf %360, %361 : vector<16x16xf32>
    %363 = arith.addf %358, %362 : vector<16x16xf32>
    %c65 = arith.constant 65 : index
    %364 = memref.load %arg2[%c65] : memref<98xf32, #tpu.memory_space<smem>>
    %365 = vector.extract_strided_slice %353 {offsets = [0, 2], sizes = [16, 16], strides = [1, 1]} : vector<16x22xf32> to vector<16x16xf32>
    %366 = vector.broadcast %364 : f32 to vector<16x16xf32>
    %367 = arith.mulf %365, %366 : vector<16x16xf32>
    %368 = arith.addf %363, %367 : vector<16x16xf32>
    %c66 = arith.constant 66 : index
    %369 = memref.load %arg2[%c66] : memref<98xf32, #tpu.memory_space<smem>>
    %370 = vector.extract_strided_slice %353 {offsets = [0, 3], sizes = [16, 16], strides = [1, 1]} : vector<16x22xf32> to vector<16x16xf32>
    %371 = vector.broadcast %369 : f32 to vector<16x16xf32>
    %372 = arith.mulf %370, %371 : vector<16x16xf32>
    %373 = arith.addf %368, %372 : vector<16x16xf32>
    %c67 = arith.constant 67 : index
    %374 = memref.load %arg2[%c67] : memref<98xf32, #tpu.memory_space<smem>>
    %375 = vector.extract_strided_slice %353 {offsets = [0, 4], sizes = [16, 16], strides = [1, 1]} : vector<16x22xf32> to vector<16x16xf32>
    %376 = vector.broadcast %374 : f32 to vector<16x16xf32>
    %377 = arith.mulf %375, %376 : vector<16x16xf32>
    %378 = arith.addf %373, %377 : vector<16x16xf32>
    %c68 = arith.constant 68 : index
    %379 = memref.load %arg2[%c68] : memref<98xf32, #tpu.memory_space<smem>>
    %380 = vector.extract_strided_slice %353 {offsets = [0, 5], sizes = [16, 16], strides = [1, 1]} : vector<16x22xf32> to vector<16x16xf32>
    %381 = vector.broadcast %379 : f32 to vector<16x16xf32>
    %382 = arith.mulf %380, %381 : vector<16x16xf32>
    %383 = arith.addf %378, %382 : vector<16x16xf32>
    %c69 = arith.constant 69 : index
    %384 = memref.load %arg2[%c69] : memref<98xf32, #tpu.memory_space<smem>>
    %385 = vector.extract_strided_slice %353 {offsets = [0, 6], sizes = [16, 16], strides = [1, 1]} : vector<16x22xf32> to vector<16x16xf32>
    %386 = vector.broadcast %384 : f32 to vector<16x16xf32>
    %387 = arith.mulf %385, %386 : vector<16x16xf32>
    %388 = arith.addf %383, %387 : vector<16x16xf32>
    %c1_57 = arith.constant 1 : index
    %c3_58 = arith.constant 3 : index
    %c0_59 = arith.constant 0 : index
    %389 = vector.load %arg4[%c1_57, %c3_58, %c0_59] : memref<2x22x22xf32, #tpu.memory_space<vmem>>, vector<1x16x22xf32>
    %390 = vector.shape_cast %389 : vector<1x16x22xf32> to vector<16x22xf32>
    %c70 = arith.constant 70 : index
    %391 = memref.load %arg2[%c70] : memref<98xf32, #tpu.memory_space<smem>>
    %392 = vector.extract_strided_slice %390 {offsets = [0, 0], sizes = [16, 16], strides = [1, 1]} : vector<16x22xf32> to vector<16x16xf32>
    %393 = vector.broadcast %391 : f32 to vector<16x16xf32>
    %394 = arith.mulf %392, %393 : vector<16x16xf32>
    %395 = arith.addf %388, %394 : vector<16x16xf32>
    %c71 = arith.constant 71 : index
    %396 = memref.load %arg2[%c71] : memref<98xf32, #tpu.memory_space<smem>>
    %397 = vector.extract_strided_slice %390 {offsets = [0, 1], sizes = [16, 16], strides = [1, 1]} : vector<16x22xf32> to vector<16x16xf32>
    %398 = vector.broadcast %396 : f32 to vector<16x16xf32>
    %399 = arith.mulf %397, %398 : vector<16x16xf32>
    %400 = arith.addf %395, %399 : vector<16x16xf32>
    %c72 = arith.constant 72 : index
    %401 = memref.load %arg2[%c72] : memref<98xf32, #tpu.memory_space<smem>>
    %402 = vector.extract_strided_slice %390 {offsets = [0, 2], sizes = [16, 16], strides = [1, 1]} : vector<16x22xf32> to vector<16x16xf32>
    %403 = vector.broadcast %401 : f32 to vector<16x16xf32>
    %404 = arith.mulf %402, %403 : vector<16x16xf32>
    %405 = arith.addf %400, %404 : vector<16x16xf32>
    %c73 = arith.constant 73 : index
    %406 = memref.load %arg2[%c73] : memref<98xf32, #tpu.memory_space<smem>>
    %407 = vector.extract_strided_slice %390 {offsets = [0, 3], sizes = [16, 16], strides = [1, 1]} : vector<16x22xf32> to vector<16x16xf32>
    %408 = vector.broadcast %406 : f32 to vector<16x16xf32>
    %409 = arith.mulf %407, %408 : vector<16x16xf32>
    %410 = arith.addf %405, %409 : vector<16x16xf32>
    %c74 = arith.constant 74 : index
    %411 = memref.load %arg2[%c74] : memref<98xf32, #tpu.memory_space<smem>>
    %412 = vector.extract_strided_slice %390 {offsets = [0, 4], sizes = [16, 16], strides = [1, 1]} : vector<16x22xf32> to vector<16x16xf32>
    %413 = vector.broadcast %411 : f32 to vector<16x16xf32>
    %414 = arith.mulf %412, %413 : vector<16x16xf32>
    %415 = arith.addf %410, %414 : vector<16x16xf32>
    %c75 = arith.constant 75 : index
    %416 = memref.load %arg2[%c75] : memref<98xf32, #tpu.memory_space<smem>>
    %417 = vector.extract_strided_slice %390 {offsets = [0, 5], sizes = [16, 16], strides = [1, 1]} : vector<16x22xf32> to vector<16x16xf32>
    %418 = vector.broadcast %416 : f32 to vector<16x16xf32>
    %419 = arith.mulf %417, %418 : vector<16x16xf32>
    %420 = arith.addf %415, %419 : vector<16x16xf32>
    %c76 = arith.constant 76 : index
    %421 = memref.load %arg2[%c76] : memref<98xf32, #tpu.memory_space<smem>>
    %422 = vector.extract_strided_slice %390 {offsets = [0, 6], sizes = [16, 16], strides = [1, 1]} : vector<16x22xf32> to vector<16x16xf32>
    %423 = vector.broadcast %421 : f32 to vector<16x16xf32>
    %424 = arith.mulf %422, %423 : vector<16x16xf32>
    %425 = arith.addf %420, %424 : vector<16x16xf32>
    %c1_60 = arith.constant 1 : index
    %c4_61 = arith.constant 4 : index
    %c0_62 = arith.constant 0 : index
    %426 = vector.load %arg4[%c1_60, %c4_61, %c0_62] : memref<2x22x22xf32, #tpu.memory_space<vmem>>, vector<1x16x22xf32>
    %427 = vector.shape_cast %426 : vector<1x16x22xf32> to vector<16x22xf32>
    %c77 = arith.constant 77 : index
    %428 = memref.load %arg2[%c77] : memref<98xf32, #tpu.memory_space<smem>>
    %429 = vector.extract_strided_slice %427 {offsets = [0, 0], sizes = [16, 16], strides = [1, 1]} : vector<16x22xf32> to vector<16x16xf32>
    %430 = vector.broadcast %428 : f32 to vector<16x16xf32>
    %431 = arith.mulf %429, %430 : vector<16x16xf32>
    %432 = arith.addf %425, %431 : vector<16x16xf32>
    %c78 = arith.constant 78 : index
    %433 = memref.load %arg2[%c78] : memref<98xf32, #tpu.memory_space<smem>>
    %434 = vector.extract_strided_slice %427 {offsets = [0, 1], sizes = [16, 16], strides = [1, 1]} : vector<16x22xf32> to vector<16x16xf32>
    %435 = vector.broadcast %433 : f32 to vector<16x16xf32>
    %436 = arith.mulf %434, %435 : vector<16x16xf32>
    %437 = arith.addf %432, %436 : vector<16x16xf32>
    %c79 = arith.constant 79 : index
    %438 = memref.load %arg2[%c79] : memref<98xf32, #tpu.memory_space<smem>>
    %439 = vector.extract_strided_slice %427 {offsets = [0, 2], sizes = [16, 16], strides = [1, 1]} : vector<16x22xf32> to vector<16x16xf32>
    %440 = vector.broadcast %438 : f32 to vector<16x16xf32>
    %441 = arith.mulf %439, %440 : vector<16x16xf32>
    %442 = arith.addf %437, %441 : vector<16x16xf32>
    %c80 = arith.constant 80 : index
    %443 = memref.load %arg2[%c80] : memref<98xf32, #tpu.memory_space<smem>>
    %444 = vector.extract_strided_slice %427 {offsets = [0, 3], sizes = [16, 16], strides = [1, 1]} : vector<16x22xf32> to vector<16x16xf32>
    %445 = vector.broadcast %443 : f32 to vector<16x16xf32>
    %446 = arith.mulf %444, %445 : vector<16x16xf32>
    %447 = arith.addf %442, %446 : vector<16x16xf32>
    %c81 = arith.constant 81 : index
    %448 = memref.load %arg2[%c81] : memref<98xf32, #tpu.memory_space<smem>>
    %449 = vector.extract_strided_slice %427 {offsets = [0, 4], sizes = [16, 16], strides = [1, 1]} : vector<16x22xf32> to vector<16x16xf32>
    %450 = vector.broadcast %448 : f32 to vector<16x16xf32>
    %451 = arith.mulf %449, %450 : vector<16x16xf32>
    %452 = arith.addf %447, %451 : vector<16x16xf32>
    %c82 = arith.constant 82 : index
    %453 = memref.load %arg2[%c82] : memref<98xf32, #tpu.memory_space<smem>>
    %454 = vector.extract_strided_slice %427 {offsets = [0, 5], sizes = [16, 16], strides = [1, 1]} : vector<16x22xf32> to vector<16x16xf32>
    %455 = vector.broadcast %453 : f32 to vector<16x16xf32>
    %456 = arith.mulf %454, %455 : vector<16x16xf32>
    %457 = arith.addf %452, %456 : vector<16x16xf32>
    %c83 = arith.constant 83 : index
    %458 = memref.load %arg2[%c83] : memref<98xf32, #tpu.memory_space<smem>>
    %459 = vector.extract_strided_slice %427 {offsets = [0, 6], sizes = [16, 16], strides = [1, 1]} : vector<16x22xf32> to vector<16x16xf32>
    %460 = vector.broadcast %458 : f32 to vector<16x16xf32>
    %461 = arith.mulf %459, %460 : vector<16x16xf32>
    %462 = arith.addf %457, %461 : vector<16x16xf32>
    %c1_63 = arith.constant 1 : index
    %c5_64 = arith.constant 5 : index
    %c0_65 = arith.constant 0 : index
    %463 = vector.load %arg4[%c1_63, %c5_64, %c0_65] : memref<2x22x22xf32, #tpu.memory_space<vmem>>, vector<1x16x22xf32>
    %464 = vector.shape_cast %463 : vector<1x16x22xf32> to vector<16x22xf32>
    %c84 = arith.constant 84 : index
    %465 = memref.load %arg2[%c84] : memref<98xf32, #tpu.memory_space<smem>>
    %466 = vector.extract_strided_slice %464 {offsets = [0, 0], sizes = [16, 16], strides = [1, 1]} : vector<16x22xf32> to vector<16x16xf32>
    %467 = vector.broadcast %465 : f32 to vector<16x16xf32>
    %468 = arith.mulf %466, %467 : vector<16x16xf32>
    %469 = arith.addf %462, %468 : vector<16x16xf32>
    %c85 = arith.constant 85 : index
    %470 = memref.load %arg2[%c85] : memref<98xf32, #tpu.memory_space<smem>>
    %471 = vector.extract_strided_slice %464 {offsets = [0, 1], sizes = [16, 16], strides = [1, 1]} : vector<16x22xf32> to vector<16x16xf32>
    %472 = vector.broadcast %470 : f32 to vector<16x16xf32>
    %473 = arith.mulf %471, %472 : vector<16x16xf32>
    %474 = arith.addf %469, %473 : vector<16x16xf32>
    %c86 = arith.constant 86 : index
    %475 = memref.load %arg2[%c86] : memref<98xf32, #tpu.memory_space<smem>>
    %476 = vector.extract_strided_slice %464 {offsets = [0, 2], sizes = [16, 16], strides = [1, 1]} : vector<16x22xf32> to vector<16x16xf32>
    %477 = vector.broadcast %475 : f32 to vector<16x16xf32>
    %478 = arith.mulf %476, %477 : vector<16x16xf32>
    %479 = arith.addf %474, %478 : vector<16x16xf32>
    %c87 = arith.constant 87 : index
    %480 = memref.load %arg2[%c87] : memref<98xf32, #tpu.memory_space<smem>>
    %481 = vector.extract_strided_slice %464 {offsets = [0, 3], sizes = [16, 16], strides = [1, 1]} : vector<16x22xf32> to vector<16x16xf32>
    %482 = vector.broadcast %480 : f32 to vector<16x16xf32>
    %483 = arith.mulf %481, %482 : vector<16x16xf32>
    %484 = arith.addf %479, %483 : vector<16x16xf32>
    %c88 = arith.constant 88 : index
    %485 = memref.load %arg2[%c88] : memref<98xf32, #tpu.memory_space<smem>>
    %486 = vector.extract_strided_slice %464 {offsets = [0, 4], sizes = [16, 16], strides = [1, 1]} : vector<16x22xf32> to vector<16x16xf32>
    %487 = vector.broadcast %485 : f32 to vector<16x16xf32>
    %488 = arith.mulf %486, %487 : vector<16x16xf32>
    %489 = arith.addf %484, %488 : vector<16x16xf32>
    %c89 = arith.constant 89 : index
    %490 = memref.load %arg2[%c89] : memref<98xf32, #tpu.memory_space<smem>>
    %491 = vector.extract_strided_slice %464 {offsets = [0, 5], sizes = [16, 16], strides = [1, 1]} : vector<16x22xf32> to vector<16x16xf32>
    %492 = vector.broadcast %490 : f32 to vector<16x16xf32>
    %493 = arith.mulf %491, %492 : vector<16x16xf32>
    %494 = arith.addf %489, %493 : vector<16x16xf32>
    %c90 = arith.constant 90 : index
    %495 = memref.load %arg2[%c90] : memref<98xf32, #tpu.memory_space<smem>>
    %496 = vector.extract_strided_slice %464 {offsets = [0, 6], sizes = [16, 16], strides = [1, 1]} : vector<16x22xf32> to vector<16x16xf32>
    %497 = vector.broadcast %495 : f32 to vector<16x16xf32>
    %498 = arith.mulf %496, %497 : vector<16x16xf32>
    %499 = arith.addf %494, %498 : vector<16x16xf32>
    %c1_66 = arith.constant 1 : index
    %c6_67 = arith.constant 6 : index
    %c0_68 = arith.constant 0 : index
    %500 = vector.load %arg4[%c1_66, %c6_67, %c0_68] : memref<2x22x22xf32, #tpu.memory_space<vmem>>, vector<1x16x22xf32>
    %501 = vector.shape_cast %500 : vector<1x16x22xf32> to vector<16x22xf32>
    %c91 = arith.constant 91 : index
    %502 = memref.load %arg2[%c91] : memref<98xf32, #tpu.memory_space<smem>>
    %503 = vector.extract_strided_slice %501 {offsets = [0, 0], sizes = [16, 16], strides = [1, 1]} : vector<16x22xf32> to vector<16x16xf32>
    %504 = vector.broadcast %502 : f32 to vector<16x16xf32>
    %505 = arith.mulf %503, %504 : vector<16x16xf32>
    %506 = arith.addf %499, %505 : vector<16x16xf32>
    %c92 = arith.constant 92 : index
    %507 = memref.load %arg2[%c92] : memref<98xf32, #tpu.memory_space<smem>>
    %508 = vector.extract_strided_slice %501 {offsets = [0, 1], sizes = [16, 16], strides = [1, 1]} : vector<16x22xf32> to vector<16x16xf32>
    %509 = vector.broadcast %507 : f32 to vector<16x16xf32>
    %510 = arith.mulf %508, %509 : vector<16x16xf32>
    %511 = arith.addf %506, %510 : vector<16x16xf32>
    %c93 = arith.constant 93 : index
    %512 = memref.load %arg2[%c93] : memref<98xf32, #tpu.memory_space<smem>>
    %513 = vector.extract_strided_slice %501 {offsets = [0, 2], sizes = [16, 16], strides = [1, 1]} : vector<16x22xf32> to vector<16x16xf32>
    %514 = vector.broadcast %512 : f32 to vector<16x16xf32>
    %515 = arith.mulf %513, %514 : vector<16x16xf32>
    %516 = arith.addf %511, %515 : vector<16x16xf32>
    %c94 = arith.constant 94 : index
    %517 = memref.load %arg2[%c94] : memref<98xf32, #tpu.memory_space<smem>>
    %518 = vector.extract_strided_slice %501 {offsets = [0, 3], sizes = [16, 16], strides = [1, 1]} : vector<16x22xf32> to vector<16x16xf32>
    %519 = vector.broadcast %517 : f32 to vector<16x16xf32>
    %520 = arith.mulf %518, %519 : vector<16x16xf32>
    %521 = arith.addf %516, %520 : vector<16x16xf32>
    %c95 = arith.constant 95 : index
    %522 = memref.load %arg2[%c95] : memref<98xf32, #tpu.memory_space<smem>>
    %523 = vector.extract_strided_slice %501 {offsets = [0, 4], sizes = [16, 16], strides = [1, 1]} : vector<16x22xf32> to vector<16x16xf32>
    %524 = vector.broadcast %522 : f32 to vector<16x16xf32>
    %525 = arith.mulf %523, %524 : vector<16x16xf32>
    %526 = arith.addf %521, %525 : vector<16x16xf32>
    %c96 = arith.constant 96 : index
    %527 = memref.load %arg2[%c96] : memref<98xf32, #tpu.memory_space<smem>>
    %528 = vector.extract_strided_slice %501 {offsets = [0, 5], sizes = [16, 16], strides = [1, 1]} : vector<16x22xf32> to vector<16x16xf32>
    %529 = vector.broadcast %527 : f32 to vector<16x16xf32>
    %530 = arith.mulf %528, %529 : vector<16x16xf32>
    %531 = arith.addf %526, %530 : vector<16x16xf32>
    %c97 = arith.constant 97 : index
    %532 = memref.load %arg2[%c97] : memref<98xf32, #tpu.memory_space<smem>>
    %533 = vector.extract_strided_slice %501 {offsets = [0, 6], sizes = [16, 16], strides = [1, 1]} : vector<16x22xf32> to vector<16x16xf32>
    %534 = vector.broadcast %532 : f32 to vector<16x16xf32>
    %535 = arith.mulf %533, %534 : vector<16x16xf32>
    %536 = arith.addf %531, %535 : vector<16x16xf32>
    %537 = arith.negf %536 : vector<16x16xf32>
    %538 = math.exp %537 : vector<16x16xf32>
    %cst_69 = arith.constant 1.000000e+00 : f32
    %539 = vector.broadcast %cst_69 : f32 to vector<16x16xf32>
    %540 = arith.addf %539, %538 : vector<16x16xf32>
    %541 = arith.divf %539, %540 : vector<16x16xf32>
    %c0_70 = arith.constant 0 : index
    %c0_71 = arith.constant 0 : index
    %c0_72 = arith.constant 0 : index
    %c0_73 = arith.constant 0 : index
    %542 = vector.load %arg3[%c0_70, %c0_71, %c0_72, %c0_73] : memref<1x1x16x16xf32, #tpu.memory_space<vmem>>, vector<1x1x16x16xf32>
    %543 = vector.shape_cast %542 : vector<1x1x16x16xf32> to vector<16x16xf32>
    %544 = vector.shape_cast %541 : vector<16x16xf32> to vector<1x1x16x16xf32>
    tpu.vector_store %arg3[%c0_70, %c0_71, %c0_72, %c0_73], %544 {strides = array<i32>} : memref<1x1x16x16xf32, #tpu.memory_space<vmem>>, vector<1x1x16x16xf32>,
    return
  }
  func.func @transform_0(%arg0: i32) -> (i32, i32, i32, i32) {
    %c0_i32 = arith.constant 0 : i32
    %c0_i32_0 = arith.constant 0 : i32
    %c0_i32_1 = arith.constant 0 : i32
    %c0_i32_2 = arith.constant 0 : i32
    return %arg0, %c0_i32, %c0_i32_0, %c0_i32_1 : i32, i32, i32, i32
  }
  func.func @transform_1(%arg0: i32) -> i32 {
    %c0_i32 = arith.constant 0 : i32
    %c0_i32_0 = arith.constant 0 : i32
    return %c0_i32 : i32
  }
  func.func @transform_2(%arg0: i32) -> (i32, i32, i32, i32) {
    %c0_i32 = arith.constant 0 : i32
    %c0_i32_0 = arith.constant 0 : i32
    %c0_i32_1 = arith.constant 0 : i32
    %c0_i32_2 = arith.constant 0 : i32
    return %arg0, %c0_i32, %c0_i32_0, %c0_i32_1 : i32, i32, i32, i32
  }
}

</mosaic_0001>

<llo_original>
// kernel: tpu_custom_call.1
$region0: #{tpu_custom_call.1}
  #allocation0 [shape = 'u32[]', space=smem, size = 0x4, offset = 0x4, fixed_abs, tag = 'smem constant byte address 0x4 - core index']
  #allocation1 [shape = 'u32[144,128]{1,0:T(1,128)}', space=vmem, size = 0x12000, scoped, tag = 'internal scratch']
  #allocation2 [shape = 'f32[2,22,22]{2,1,0:T(8,128)}', space=vmem, size = 0x6000, scoped, tag = 'scratch operand']
  %s0 = inlined_call_operand.hbm [shape: f32[2,4,16,16], index: 0, kind: input, shape index: {}]
  %s1 = inlined_call_operand.vmem [shape: f32[98], index: 1, kind: input, shape index: {}]
  %s2 = inlined_call_operand.hbm [shape: f32[2,1,16,16], index: 2, kind: output, shape index: {}]
  %s3 = sld [smem:[#allocation0]]
  $region49: #{tpu_custom_call.1} parent=0
    _
  %s5 = ssub.s32 1, %s3
  %s6 = scalar_select 0, %s5, %s3
  $region1: #{tpu_custom_call.1} parent=0
    #allocation3 [shape = 'u8[65536]{0}', space=vmem, size = 0x10000, scoped, tag = 'input window, operand 0']
    #allocation4 [shape = 's32[2]{0}', space=sflag, size = 0x8, scoped, tag = 'scoped memory for tpu_custom_call.1']
    #allocation5 [shape = 's32[2]{0}', space=sflag, size = 0x8, scoped, tag = 'scoped memory for tpu_custom_call.1']
    #allocation6 [shape = 's32[2]{0}', space=sflag, size = 0x8, scoped, tag = 'scoped memory for tpu_custom_call.1']
    #allocation7 [shape = 'u8[512]{0}', space=smem, size = 0x200, scoped, tag = 'input window, operand 1, single buffered']
    #allocation8 [shape = 'u8[16384]{0}', space=vmem, size = 0x4000, scoped, tag = 'output window, operand 0']
    %7 = vsyncpa [#allocation4], 0
    %s8 = scalar_lea.sflag [#allocation4], 1
    %9 = vsyncpa %s8, 0
    %10 = vsyncpa [#allocation6], 0
    %11 = vsyncpa [#allocation5], 0
    %s12 = scalar_lea.sflag [#allocation5], 1
    %13 = vsyncpa %s12, 0
    loop: start=0, step=1, limit=4
    $region2: #{tpu_custom_call.1} parent=1 // loop_pre_header
      _
    $region3: #{tpu_custom_call.1} parent=1 // loop_header
      %s15 = sphi 0, %s19
      %p16 = scmp.ge.s32.totalorder %s15, 4
      %s25 = sphi 0, %s27
      %s28 = sphi 0, %s25
      %s29 = sphi 0, %s28
      %s45 = sphi 0, %s29
      %s49 = sphi 0, %s49
      %s51 = sphi 0, %s49
      %s52 = sphi 0, %s51
      %s66 = sphi 0, %s52
      %s72 = sphi 0, %s74
      %s75 = sphi 0, %s72
      %s76 = sphi 0, %s75
      %s92 = sphi 0, %s76
    $region4: #{tpu_custom_call.1} parent=1 // loop_header_branch
      %18 = sbr.rel (%p16) target = $region8
    $region5: #{tpu_custom_call.1} parent=1 // loop_body
      %s20 = ssub.s32 %s15, 1
      %s21 = ssub.s32 %s15, 2
      %s22 = sadd.s32 %s15, 1
      %s23 = ssub.s32 %s15, %s22
      %p24 = scmp.eq.s32.totalorder %s23, 0
      %s26 = sadd.s32 %s25, 1
      %s27 = scalar_select %p24, %s25, %s26
      %p30 = pneg %p24
      %p31 = scmp.eq.s32.totalorder %s15, 1
      %p32 = por %p30, %p31
      %p33 = scmp.ne.s32.totalorder %s25, %s28
      %p34 = scmp.eq.s32.totalorder %s15, 0
      %p35 = por %p33, %p34
      %p36 = scmp.ne.s32.totalorder %s25, %s28
      %p37 = scmp.eq.s32.totalorder %s20, 1
      %p38 = por %p36, %p37
      %p39 = scmp.ne.s32.totalorder %s28, %s29
      %p40 = scmp.eq.s32.totalorder %s20, 0
      %p41 = por %p39, %p40
      %p42 = scmp.ne.s32.totalorder %s28, %s29
      %p43 = scmp.eq.s32.totalorder %s21, 1
      %p44 = por %p42, %p43
      %p46 = scmp.ne.s32.totalorder %s29, %s45
      %p47 = scmp.eq.s32.totalorder %s21, 0
      %p48 = por %p46, %p47
      %s50 = sadd.s32 %s49, 1
      %p53 = scmp.eq.s32.totalorder %s15, 1
      %p54 = scmp.ne.s32.totalorder %s49, %s51
      %p55 = scmp.eq.s32.totalorder %s15, 0
      %p56 = por %p54, %p55
      %p57 = scmp.ne.s32.totalorder %s49, %s51
      %p58 = scmp.eq.s32.totalorder %s20, 1
      %p59 = por %p57, %p58
      %p60 = scmp.ne.s32.totalorder %s51, %s52
      %p61 = scmp.eq.s32.totalorder %s20, 0
      %p62 = por %p60, %p61
      %p63 = scmp.ne.s32.totalorder %s51, %s52
      %p64 = scmp.eq.s32.totalorder %s21, 1
      %p65 = por %p63, %p64
      %p67 = scmp.ne.s32.totalorder %s52, %s66
      %p68 = scmp.eq.s32.totalorder %s21, 0
      %p69 = por %p67, %p68
      %s70 = ssub.s32 %s15, %s22
      %p71 = scmp.eq.s32.totalorder %s70, 0
      %s73 = sadd.s32 %s72, 1
      %s74 = scalar_select %p71, %s72, %s73
      %p77 = pneg %p71
      %p78 = scmp.eq.s32.totalorder %s15, 1
      %p79 = por %p77, %p78
      %p80 = scmp.ne.s32.totalorder %s72, %s75
      %p81 = scmp.eq.s32.totalorder %s15, 0
      %p82 = por %p80, %p81
      %p83 = scmp.ne.s32.totalorder %s72, %s75
      %p84 = scmp.eq.s32.totalorder %s20, 1
      %p85 = por %p83, %p84
      %p86 = scmp.ne.s32.totalorder %s75, %s76
      %p87 = scmp.eq.s32.totalorder %s20, 0
      %p88 = por %p86, %p87
      %p89 = scmp.ne.s32.totalorder %s75, %s76
      %p90 = scmp.eq.s32.totalorder %s21, 1
      %p91 = por %p89, %p90
      %p93 = scmp.ne.s32.totalorder %s76, %s92
      %p94 = scmp.eq.s32.totalorder %s21, 0
      %p95 = por %p93, %p94
      %p96 = scmp.le.s32.totalorder 1, %s15
      %p97 = scmp.lt.s32.totalorder %s15, 3
      %p98 = pnand %p96, %p97
      %p99 = pneg %p98
      // Predicated region
      $region9: #{tpu_custom_call.1} parent=5 // pred_check
        _
      $region10: #{tpu_custom_call.1} parent=5 // pred_check_branch
        %101 = sbr.rel (%p98) target = $region12
      $region11: #{tpu_custom_call.1} parent=5 // pred_region
        %s102 = ssub.s32 %s15, 1
        // Predicated region
        $region13: #{tpu_custom_call.1} parent=11 // pred_check
          %p103 = pneg %p62
        $region14: #{tpu_custom_call.1} parent=11 // pred_check_branch
          %105 = sbr.rel (%p103) target = $region16
        $region15: #{tpu_custom_call.1} parent=11 // pred_region
          %s107 = ssub.s32 16, 16
          %108 = vsyncadd [#allocation6], %s107
          %s110 = sshll.u32 %s1, 4
          %s111 = int_to_ptr.vmem [resolvable:$true] %s110
          %113 = dma.vmem_to_smem %s111, 16, [#allocation7], [#allocation6]
        $region16: #{tpu_custom_call.1} parent=11 // pred_fallthru
          _
      $region12: #{tpu_custom_call.1} parent=5 // pred_fallthru
        _
      %p114 = scmp.lt.s32.totalorder %s15, 2
      // Predicated region
      $region17: #{tpu_custom_call.1} parent=5 // pred_check
        %p115 = pneg %p114
      $region18: #{tpu_custom_call.1} parent=5 // pred_check_branch
        %117 = sbr.rel (%p115) target = $region20
      $region19: #{tpu_custom_call.1} parent=5 // pred_region
        // Predicated region
        $region21: #{tpu_custom_call.1} parent=19 // pred_check
          %p118 = pneg %p35
        $region22: #{tpu_custom_call.1} parent=19 // pred_check_branch
          %120 = sbr.rel (%p118) target = $region24
        $region23: #{tpu_custom_call.1} parent=19 // pred_region
          %s121 = sand.u32 %s25, 1
          %s122 = scalar_lea.sflag [#allocation4], %s121
          %s123 = sand.u32 %s25, 1
          %s124 = smul.addr %s123, 64
          %s125 = scalar_lea.vmem [#allocation3], %s124
          %s127 = ssub.s32 1024, 1024
          %128 = vsyncadd %s122, %s127
          %s129 = smul.addr %s15, 8
          %s130 = smul.addr %s129, 128
          %s131 = scalar_lea.hbm %s0, %s130
          %s132 = sshll.u32 %s125, 4
          %s133 = int_to_ptr.vmem [resolvable:$true] %s132
          %138 = dma.hbm_to_vmem [thread:$0]  %s131, 1024, %s133, %s122, 128, 128, 8
        $region24: #{tpu_custom_call.1} parent=19 // pred_fallthru
          _
      $region20: #{tpu_custom_call.1} parent=5 // pred_fallthru
        _
      %p139 = scmp.le.s32.totalorder 1, %s15
      %p140 = scmp.lt.s32.totalorder %s15, 3
      %p141 = pnand %p139, %p140
      %p142 = pneg %p141
      // Predicated region
      $region25: #{tpu_custom_call.1} parent=5 // pred_check
        _
      $region26: #{tpu_custom_call.1} parent=5 // pred_check_branch
        %144 = sbr.rel (%p141) target = $region28
      $region27: #{tpu_custom_call.1} parent=5 // pred_region
        %s145 = ssub.s32 %s15, 1
        %s146 = sand.u32 %s28, 1
        %s147 = scalar_lea.sflag [#allocation4], %s146
        %s148 = sand.u32 %s28, 1
        %s149 = smul.addr %s148, 64
        %s150 = scalar_lea.vmem [#allocation3], %s149
        // Predicated region
        $region29: #{tpu_custom_call.1} parent=27 // pred_check
          %p151 = pneg %p41
        $region30: #{tpu_custom_call.1} parent=27 // pred_check_branch
          %153 = sbr.rel (%p151) target = $region32
        $region31: #{tpu_custom_call.1} parent=27 // pred_region
          %154 = dma.done %s147, 1024
        $region32: #{tpu_custom_call.1} parent=27 // pred_fallthru
          _
        // Predicated region
        $region33: #{tpu_custom_call.1} parent=27 // pred_check
          %p155 = pneg %p62
        $region34: #{tpu_custom_call.1} parent=27 // pred_check_branch
          %157 = sbr.rel (%p155) target = $region36
        $region35: #{tpu_custom_call.1} parent=27 // pred_region
          %158 = dma.done [#allocation6], 16
        $region36: #{tpu_custom_call.1} parent=27 // pred_fallthru
          _
        %159 = sfence
        %s160 = sand.u32 %s28, 1
        %s161 = scalar_lea.sflag [#allocation4], %s160
        %s162 = sand.u32 %s28, 1
        %s163 = smul.addr %s162, 64
        %s164 = scalar_lea.vmem [#allocation3], %s163
        %p165 = pneg %p41
        %p166 = pneg %p38
        %p167 = pneg %p62
        %p168 = pneg %p59
        %p169 = pneg %p88
        %p170 = pneg %p85
        %s171 = sand.u32 %s75, 1
        %s172 = scalar_lea.sflag [#allocation5], %s171
        %s173 = sand.u32 %s75, 1
        %s174 = smul.addr %s173, 16
        %s175 = scalar_lea.vmem [#allocation8], %s174
        %v176 = vld [vmem:[%s150] sm:$0xff]
        %v177 = vld [vmem:[%s150 + $0x8] sm:$0xff]
        %v178 = vld [vmem:[%s150 + $0x10] sm:$0xff]
        %v179 = vld [vmem:[%s150 + $0x18] sm:$0xff]
        %v180 = vld [vmem:[%s150 + $0x20] sm:$0xff]
        %v181 = vld [vmem:[%s150 + $0x28] sm:$0xff]
        %v182 = vld [vmem:[%s150 + $0x30] sm:$0xff]
        %v183 = vld [vmem:[%s150 + $0x38] sm:$0xff]
        %vm184 = vcmask 130048
        %v185 = vsel %vm184, %v176, 0.0
        %v186 = vsel %vm184, %v178, 0.0
        %v187 = vadd.f32 %v185, %v186
        %v188 = vsel %vm184, %v180, 0.0
        %v189 = vadd.f32 %v187, %v188
        %v190 = vsel %vm184, %v182, 0.0
        %v191 = vadd.f32 %v189, %v190
        %v192 = vsel %vm184, %v177, 0.0
        %v193 = vsel %vm184, %v179, 0.0
        %v194 = vadd.f32 %v192, %v193
        %v195 = vsel %vm184, %v181, 0.0
        %v196 = vadd.f32 %v194, %v195
        %v197 = vsel %vm184, %v183, 0.0
        %v198 = vadd.f32 %v196, %v197
        %v199 = vrcp.pop 4.0
        %v200 = vmul.f32 %v191, %v199
        %v201 = vmul.f32 %v198, %v199
        %v202 = vsel %vm184, %v176, -inf
        %v203 = vsel %vm184, %v178, -inf
        %v204 = vsel %vm184, %v180, -inf
        %v205 = vmax.f32 %v202, %v204
        %v206 = vsel %vm184, %v182, -inf
        %v207 = vmax.f32 %v203, %v206
        %v208 = vmax.f32 %v205, %v207
        %v209 = vsel %vm184, %v177, -inf
        %v210 = vsel %vm184, %v179, -inf
        %v211 = vsel %vm184, %v181, -inf
        %v212 = vmax.f32 %v209, %v211
        %v213 = vsel %vm184, %v183, -inf
        %v214 = vmax.f32 %v210, %v213
        %v215 = vmax.f32 %v212, %v214
        %vm216 = vcmask 174080
        %217 = vst.msk [vmem:[#allocation2] sm:$0x7] %vm216, 0.0
        %218 = vst.msk [vmem:[#allocation2 + $0x18] sm:$0x7] %vm216, 0.0
        %219 = vst.msk [vmem:[#allocation2 + $0x13] sm:$0x7] %vm216, 0.0
        %220 = vst.msk [vmem:[#allocation2 + $0x2b] sm:$0x7] %vm216, 0.0
        %vm221 = vcmask 23552
        %222 = vst.msk [vmem:[#allocation2 + $0x3] sm:$0xff] %vm221, 0.0
        %223 = vst.msk [vmem:[#allocation2 + $0xb] sm:$0xff] %vm221, 0.0
        %224 = vst.msk [vmem:[#allocation2 + $0x1b] sm:$0xff] %vm221, 0.0
        %225 = vst.msk [vmem:[#allocation2 + $0x23] sm:$0xff] %vm221, 0.0
        %vm226 = vcmask 179352
        %227 = vst.msk [vmem:[#allocation2 + $0x3] sm:$0xff] %vm226, 0.0
        %228 = vst.msk [vmem:[#allocation2 + $0xb] sm:$0xff] %vm226, 0.0
        %229 = vst.msk [vmem:[#allocation2 + $0x1b] sm:$0xff] %vm226, 0.0
        %230 = vst.msk [vmem:[#allocation2 + $0x23] sm:$0xff] %vm226, 0.0
        %233 = vrot.lane.b32.xlu0 %v200, 3
        %v234 = vpop.permute.xlu0 %233
        %235 = vrot.lane.b32.xlu0 %v201, 3
        %v236 = vpop.permute.xlu0 %235
        %vm239 = vcmask 154648
        %240 = vst.msk [vmem:[#allocation2 + $0x3] sm:$0xff] %vm239, %v234
        %241 = vst.msk [vmem:[#allocation2 + $0xb] sm:$0xff] %vm239, %v236
        %244 = vrot.lane.b32.xlu0 %v208, 3
        %v245 = vpop.permute.xlu0 %244
        %246 = vrot.lane.b32.xlu0 %v215, 3
        %v247 = vpop.permute.xlu0 %246
        %s250 = scalar_lea.vmem [#allocation2], 24
        %251 = vst.msk [vmem:[%s250 + $0x3] sm:$0xff] %vm239, %v245
        %252 = vst.msk [vmem:[%s250 + $0xb] sm:$0xff] %vm239, %v247
        %v253 = vld [vmem:[#allocation2] sm:$0xff]
        %v254 = vld [vmem:[#allocation2 + $0x8] sm:$0xff]
        %s255 = sld [smem:[#allocation7]]
        %v256 = vstv %s255
        %v257 = vmul.f32 %v253, %v256
        %v258 = vmul.f32 %v254, %v256
        %v259 = vadd.f32 %v257, 0.0
        %v260 = vadd.f32 %v258, 0.0
        %s261 = sld [smem:[#allocation7 + $0x1]]
        %v262 = vstv %s261
        %v263 = vmul.f32 %v253, %v262
        %v264 = vmul.f32 %v254, %v262
        %267 = vrot.lane.b32.xlu0 %v263, 127
        %v268 = vpop.permute.xlu0 %267
        %269 = vrot.lane.b32.xlu0 %v264, 127
        %v270 = vpop.permute.xlu0 %269
        %v273 = vadd.f32 %v259, %v268
        %v274 = vadd.f32 %v260, %v270
        %s275 = sld [smem:[#allocation7 + $0x2]]
        %v276 = vstv %s275
        %v277 = vmul.f32 %v253, %v276
        %v278 = vmul.f32 %v254, %v276
        %281 = vrot.lane.b32.xlu0 %v277, 126
        %v282 = vpop.permute.xlu0 %281
        %283 = vrot.lane.b32.xlu0 %v278, 126
        %v284 = vpop.permute.xlu0 %283
        %v287 = vadd.f32 %v273, %v282
        %v288 = vadd.f32 %v274, %v284
        %s289 = sld [smem:[#allocation7 + $0x3]]
        %v290 = vstv %s289
        %v291 = vmul.f32 %v253, %v290
        %v292 = vmul.f32 %v254, %v290
        %295 = vrot.lane.b32.xlu0 %v291, 125
        %v296 = vpop.permute.xlu0 %295
        %297 = vrot.lane.b32.xlu0 %v292, 125
        %v298 = vpop.permute.xlu0 %297
        %v301 = vadd.f32 %v287, %v296
        %v302 = vadd.f32 %v288, %v298
        %s303 = sld [smem:[#allocation7 + $0x4]]
        %v304 = vstv %s303
        %v305 = vmul.f32 %v253, %v304
        %v306 = vmul.f32 %v254, %v304
        %309 = vrot.lane.b32.xlu0 %v305, 124
        %v310 = vpop.permute.xlu0 %309
        %311 = vrot.lane.b32.xlu0 %v306, 124
        %v312 = vpop.permute.xlu0 %311
        %v315 = vadd.f32 %v301, %v310
        %v316 = vadd.f32 %v302, %v312
        %s317 = sld [smem:[#allocation7 + $0x5]]
        %v318 = vstv %s317
        %v319 = vmul.f32 %v253, %v318
        %v320 = vmul.f32 %v254, %v318
        %323 = vrot.lane.b32.xlu0 %v319, 123
        %v324 = vpop.permute.xlu0 %323
        %325 = vrot.lane.b32.xlu0 %v320, 123
        %v326 = vpop.permute.xlu0 %325
        %v329 = vadd.f32 %v315, %v324
        %v330 = vadd.f32 %v316, %v326
        %s331 = sld [smem:[#allocation7 + $0x6]]
        %v332 = vstv %s331
        %v333 = vmul.f32 %v253, %v332
        %v334 = vmul.f32 %v254, %v332
        %337 = vrot.lane.b32.xlu0 %v333, 122
        %v338 = vpop.permute.xlu0 %337
        %339 = vrot.lane.b32.xlu0 %v334, 122
        %v340 = vpop.permute.xlu0 %339
        %v343 = vadd.f32 %v329, %v338
        %v344 = vadd.f32 %v330, %v340
        %v345 = vld [vmem:[#allocation2 + $0x1] sm:$0xff]
        %v346 = vld [vmem:[#allocation2 + $0x9] sm:$0xff]
        %s347 = sld [smem:[#allocation7 + $0x7]]
        %v348 = vstv %s347
        %v349 = vmul.f32 %v345, %v348
        %v350 = vmul.f32 %v346, %v348
        %v351 = vadd.f32 %v343, %v349
        %v352 = vadd.f32 %v344, %v350
        %s353 = sld [smem:[#allocation7 + $0x8]]
        %v354 = vstv %s353
        %v355 = vmul.f32 %v345, %v354
        %v356 = vmul.f32 %v346, %v354
        %359 = vrot.lane.b32.xlu0 %v355, 127
        %v360 = vpop.permute.xlu0 %359
        %361 = vrot.lane.b32.xlu0 %v356, 127
        %v362 = vpop.permute.xlu0 %361
        %v365 = vadd.f32 %v351, %v360
        %v366 = vadd.f32 %v352, %v362
        %s367 = sld [smem:[#allocation7 + $0x9]]
        %v368 = vstv %s367
        %v369 = vmul.f32 %v345, %v368
        %v370 = vmul.f32 %v346, %v368
        %373 = vrot.lane.b32.xlu0 %v369, 126
        %v374 = vpop.permute.xlu0 %373
        %375 = vrot.lane.b32.xlu0 %v370, 126
        %v376 = vpop.permute.xlu0 %375
        %v379 = vadd.f32 %v365, %v374
        %v380 = vadd.f32 %v366, %v376
        %s381 = sld [smem:[#allocation7 + $0xa]]
        %v382 = vstv %s381
        %v383 = vmul.f32 %v345, %v382
        %v384 = vmul.f32 %v346, %v382
        %387 = vrot.lane.b32.xlu0 %v383, 125
        %v388 = vpop.permute.xlu0 %387
        %389 = vrot.lane.b32.xlu0 %v384, 125
        %v390 = vpop.permute.xlu0 %389
        %v393 = vadd.f32 %v379, %v388
        %v394 = vadd.f32 %v380, %v390
        %s395 = sld [smem:[#allocation7 + $0xb]]
        %v396 = vstv %s395
        %v397 = vmul.f32 %v345, %v396
        %v398 = vmul.f32 %v346, %v396
        %401 = vrot.lane.b32.xlu0 %v397, 124
        %v402 = vpop.permute.xlu0 %401
        %403 = vrot.lane.b32.xlu0 %v398, 124
        %v404 = vpop.permute.xlu0 %403
        %v407 = vadd.f32 %v393, %v402
        %v408 = vadd.f32 %v394, %v404
        %s409 = sld [smem:[#allocation7 + $0xc]]
        %v410 = vstv %s409
        %v411 = vmul.f32 %v345, %v410
        %v412 = vmul.f32 %v346, %v410
        %415 = vrot.lane.b32.xlu0 %v411, 123
        %v416 = vpop.permute.xlu0 %415
        %417 = vrot.lane.b32.xlu0 %v412, 123
        %v418 = vpop.permute.xlu0 %417
        %v421 = vadd.f32 %v407, %v416
        %v422 = vadd.f32 %v408, %v418
        %s423 = sld [smem:[#allocation7 + $0xd]]
        %v424 = vstv %s423
        %v425 = vmul.f32 %v345, %v424
        %v426 = vmul.f32 %v346, %v424
        %429 = vrot.lane.b32.xlu0 %v425, 122
        %v430 = vpop.permute.xlu0 %429
        %431 = vrot.lane.b32.xlu0 %v426, 122
        %v432 = vpop.permute.xlu0 %431
        %v435 = vadd.f32 %v421, %v430
        %v436 = vadd.f32 %v422, %v432
        %v437 = vld [vmem:[#allocation2 + $0x2] sm:$0xff]
        %v438 = vld [vmem:[#allocation2 + $0xa] sm:$0xff]
        %s439 = sld [smem:[#allocation7 + $0xe]]
        %v440 = vstv %s439
        %v441 = vmul.f32 %v437, %v440
        %v442 = vmul.f32 %v438, %v440
        %v443 = vadd.f32 %v435, %v441
        %v444 = vadd.f32 %v436, %v442
        %s445 = sld [smem:[#allocation7 + $0xf]]
        %v446 = vstv %s445
        %v447 = vmul.f32 %v437, %v446
        %v448 = vmul.f32 %v438, %v446
        %451 = vrot.lane.b32.xlu0 %v447, 127
        %v452 = vpop.permute.xlu0 %451
        %453 = vrot.lane.b32.xlu0 %v448, 127
        %v454 = vpop.permute.xlu0 %453
        %v457 = vadd.f32 %v443, %v452
        %v458 = vadd.f32 %v444, %v454
        %s459 = sld [smem:[#allocation7 + $0x10]]
        %v460 = vstv %s459
        %v461 = vmul.f32 %v437, %v460
        %v462 = vmul.f32 %v438, %v460
        %465 = vrot.lane.b32.xlu0 %v461, 126
        %v466 = vpop.permute.xlu0 %465
        %467 = vrot.lane.b32.xlu0 %v462, 126
        %v468 = vpop.permute.xlu0 %467
        %v471 = vadd.f32 %v457, %v466
        %v472 = vadd.f32 %v458, %v468
        %s473 = sld [smem:[#allocation7 + $0x11]]
        %v474 = vstv %s473
        %v475 = vmul.f32 %v437, %v474
        %v476 = vmul.f32 %v438, %v474
        %479 = vrot.lane.b32.xlu0 %v475, 125
        %v480 = vpop.permute.xlu0 %479
        %481 = vrot.lane.b32.xlu0 %v476, 125
        %v482 = vpop.permute.xlu0 %481
        %v485 = vadd.f32 %v471, %v480
        %v486 = vadd.f32 %v472, %v482
        %s487 = sld [smem:[#allocation7 + $0x12]]
        %v488 = vstv %s487
        %v489 = vmul.f32 %v437, %v488
        %v490 = vmul.f32 %v438, %v488
        %493 = vrot.lane.b32.xlu0 %v489, 124
        %v494 = vpop.permute.xlu0 %493
        %495 = vrot.lane.b32.xlu0 %v490, 124
        %v496 = vpop.permute.xlu0 %495
        %v499 = vadd.f32 %v485, %v494
        %v500 = vadd.f32 %v486, %v496
        %s501 = sld [smem:[#allocation7 + $0x13]]
        %v502 = vstv %s501
        %v503 = vmul.f32 %v437, %v502
        %v504 = vmul.f32 %v438, %v502
        %507 = vrot.lane.b32.xlu0 %v503, 123
        %v508 = vpop.permute.xlu0 %507
        %509 = vrot.lane.b32.xlu0 %v504, 123
        %v510 = vpop.permute.xlu0 %509
        %v513 = vadd.f32 %v499, %v508
        %v514 = vadd.f32 %v500, %v510
        %s515 = sld [smem:[#allocation7 + $0x14]]
        %v516 = vstv %s515
        %v517 = vmul.f32 %v437, %v516
        %v518 = vmul.f32 %v438, %v516
        %521 = vrot.lane.b32.xlu0 %v517, 122
        %v522 = vpop.permute.xlu0 %521
        %523 = vrot.lane.b32.xlu0 %v518, 122
        %v524 = vpop.permute.xlu0 %523
        %v527 = vadd.f32 %v513, %v522
        %v528 = vadd.f32 %v514, %v524
        %v529 = vld [vmem:[#allocation2 + $0x3] sm:$0xff]
        %v530 = vld [vmem:[#allocation2 + $0xb] sm:$0xff]
        %s531 = sld [smem:[#allocation7 + $0x15]]
        %v532 = vstv %s531
        %v533 = vmul.f32 %v529, %v532
        %v534 = vmul.f32 %v530, %v532
        %v535 = vadd.f32 %v527, %v533
        %v536 = vadd.f32 %v528, %v534
        %s537 = sld [smem:[#allocation7 + $0x16]]
        %v538 = vstv %s537
        %v539 = vmul.f32 %v529, %v538
        %v540 = vmul.f32 %v530, %v538
        %543 = vrot.lane.b32.xlu0 %v539, 127
        %v544 = vpop.permute.xlu0 %543
        %545 = vrot.lane.b32.xlu0 %v540, 127
        %v546 = vpop.permute.xlu0 %545
        %v549 = vadd.f32 %v535, %v544
        %v550 = vadd.f32 %v536, %v546
        %s551 = sld [smem:[#allocation7 + $0x17]]
        %v552 = vstv %s551
        %v553 = vmul.f32 %v529, %v552
        %v554 = vmul.f32 %v530, %v552
        %557 = vrot.lane.b32.xlu0 %v553, 126
        %v558 = vpop.permute.xlu0 %557
        %559 = vrot.lane.b32.xlu0 %v554, 126
        %v560 = vpop.permute.xlu0 %559
        %v563 = vadd.f32 %v549, %v558
        %v564 = vadd.f32 %v550, %v560
        %s565 = sld [smem:[#allocation7 + $0x18]]
        %v566 = vstv %s565
        %v567 = vmul.f32 %v529, %v566
        %v568 = vmul.f32 %v530, %v566
        %571 = vrot.lane.b32.xlu0 %v567, 125
        %v572 = vpop.permute.xlu0 %571
        %573 = vrot.lane.b32.xlu0 %v568, 125
        %v574 = vpop.permute.xlu0 %573
        %v577 = vadd.f32 %v563, %v572
        %v578 = vadd.f32 %v564, %v574
        %s579 = sld [smem:[#allocation7 + $0x19]]
        %v580 = vstv %s579
        %v581 = vmul.f32 %v529, %v580
        %v582 = vmul.f32 %v530, %v580
        %585 = vrot.lane.b32.xlu0 %v581, 124
        %v586 = vpop.permute.xlu0 %585
        %587 = vrot.lane.b32.xlu0 %v582, 124
        %v588 = vpop.permute.xlu0 %587
        %v591 = vadd.f32 %v577, %v586
        %v592 = vadd.f32 %v578, %v588
        %s593 = sld [smem:[#allocation7 + $0x1a]]
        %v594 = vstv %s593
        %v595 = vmul.f32 %v529, %v594
        %v596 = vmul.f32 %v530, %v594
        %599 = vrot.lane.b32.xlu0 %v595, 123
        %v600 = vpop.permute.xlu0 %599
        %601 = vrot.lane.b32.xlu0 %v596, 123
        %v602 = vpop.permute.xlu0 %601
        %v605 = vadd.f32 %v591, %v600
        %v606 = vadd.f32 %v592, %v602
        %s607 = sld [smem:[#allocation7 + $0x1b]]
        %v608 = vstv %s607
        %v609 = vmul.f32 %v529, %v608
        %v610 = vmul.f32 %v530, %v608
        %613 = vrot.lane.b32.xlu0 %v609, 122
        %v614 = vpop.permute.xlu0 %613
        %615 = vrot.lane.b32.xlu0 %v610, 122
        %v616 = vpop.permute.xlu0 %615
        %v619 = vadd.f32 %v605, %v614
        %v620 = vadd.f32 %v606, %v616
        %v621 = vld [vmem:[#allocation2 + $0x4] sm:$0xff]
        %v622 = vld [vmem:[#allocation2 + $0xc] sm:$0xff]
        %s623 = sld [smem:[#allocation7 + $0x1c]]
        %v624 = vstv %s623
        %v625 = vmul.f32 %v621, %v624
        %v626 = vmul.f32 %v622, %v624
        %v627 = vadd.f32 %v619, %v625
        %v628 = vadd.f32 %v620, %v626
        %s629 = sld [smem:[#allocation7 + $0x1d]]
        %v630 = vstv %s629
        %v631 = vmul.f32 %v621, %v630
        %v632 = vmul.f32 %v622, %v630
        %635 = vrot.lane.b32.xlu0 %v631, 127
        %v636 = vpop.permute.xlu0 %635
        %637 = vrot.lane.b32.xlu0 %v632, 127
        %v638 = vpop.permute.xlu0 %637
        %v641 = vadd.f32 %v627, %v636
        %v642 = vadd.f32 %v628, %v638
        %s643 = sld [smem:[#allocation7 + $0x1e]]
        %v644 = vstv %s643
        %v645 = vmul.f32 %v621, %v644
        %v646 = vmul.f32 %v622, %v644
        %649 = vrot.lane.b32.xlu0 %v645, 126
        %v650 = vpop.permute.xlu0 %649
        %651 = vrot.lane.b32.xlu0 %v646, 126
        %v652 = vpop.permute.xlu0 %651
        %v655 = vadd.f32 %v641, %v650
        %v656 = vadd.f32 %v642, %v652
        %s657 = sld [smem:[#allocation7 + $0x1f]]
        %v658 = vstv %s657
        %v659 = vmul.f32 %v621, %v658
        %v660 = vmul.f32 %v622, %v658
        %663 = vrot.lane.b32.xlu0 %v659, 125
        %v664 = vpop.permute.xlu0 %663
        %665 = vrot.lane.b32.xlu0 %v660, 125
        %v666 = vpop.permute.xlu0 %665
        %v669 = vadd.f32 %v655, %v664
        %v670 = vadd.f32 %v656, %v666
        %s671 = sld [smem:[#allocation7 + $0x20]]
        %v672 = vstv %s671
        %v673 = vmul.f32 %v621, %v672
        %v674 = vmul.f32 %v622, %v672
        %677 = vrot.lane.b32.xlu0 %v673, 124
        %v678 = vpop.permute.xlu0 %677
        %679 = vrot.lane.b32.xlu0 %v674, 124
        %v680 = vpop.permute.xlu0 %679
        %v683 = vadd.f32 %v669, %v678
        %v684 = vadd.f32 %v670, %v680
        %s685 = sld [smem:[#allocation7 + $0x21]]
        %v686 = vstv %s685
        %v687 = vmul.f32 %v621, %v686
        %v688 = vmul.f32 %v622, %v686
        %691 = vrot.lane.b32.xlu0 %v687, 123
        %v692 = vpop.permute.xlu0 %691
        %693 = vrot.lane.b32.xlu0 %v688, 123
        %v694 = vpop.permute.xlu0 %693
        %v697 = vadd.f32 %v683, %v692
        %v698 = vadd.f32 %v684, %v694
        %s699 = sld [smem:[#allocation7 + $0x22]]
        %v700 = vstv %s699
        %v701 = vmul.f32 %v621, %v700
        %v702 = vmul.f32 %v622, %v700
        %705 = vrot.lane.b32.xlu0 %v701, 122
        %v706 = vpop.permute.xlu0 %705
        %707 = vrot.lane.b32.xlu0 %v702, 122
        %v708 = vpop.permute.xlu0 %707
        %v711 = vadd.f32 %v697, %v706
        %v712 = vadd.f32 %v698, %v708
        %v713 = vld [vmem:[#allocation2 + $0x5] sm:$0xff]
        %v714 = vld [vmem:[#allocation2 + $0xd] sm:$0xff]
        %s715 = sld [smem:[#allocation7 + $0x23]]
        %v716 = vstv %s715
        %v717 = vmul.f32 %v713, %v716
        %v718 = vmul.f32 %v714, %v716
        %v719 = vadd.f32 %v711, %v717
        %v720 = vadd.f32 %v712, %v718
        %s721 = sld [smem:[#allocation7 + $0x24]]
        %v722 = vstv %s721
        %v723 = vmul.f32 %v713, %v722
        %v724 = vmul.f32 %v714, %v722
        %727 = vrot.lane.b32.xlu0 %v723, 127
        %v728 = vpop.permute.xlu0 %727
        %729 = vrot.lane.b32.xlu0 %v724, 127
        %v730 = vpop.permute.xlu0 %729
        %v733 = vadd.f32 %v719, %v728
        %v734 = vadd.f32 %v720, %v730
        %s735 = sld [smem:[#allocation7 + $0x25]]
        %v736 = vstv %s735
        %v737 = vmul.f32 %v713, %v736
        %v738 = vmul.f32 %v714, %v736
        %741 = vrot.lane.b32.xlu0 %v737, 126
        %v742 = vpop.permute.xlu0 %741
        %743 = vrot.lane.b32.xlu0 %v738, 126
        %v744 = vpop.permute.xlu0 %743
        %v747 = vadd.f32 %v733, %v742
        %v748 = vadd.f32 %v734, %v744
        %s749 = sld [smem:[#allocation7 + $0x26]]
        %v750 = vstv %s749
        %v751 = vmul.f32 %v713, %v750
        %v752 = vmul.f32 %v714, %v750
        %755 = vrot.lane.b32.xlu0 %v751, 125
        %v756 = vpop.permute.xlu0 %755
        %757 = vrot.lane.b32.xlu0 %v752, 125
        %v758 = vpop.permute.xlu0 %757
        %v761 = vadd.f32 %v747, %v756
        %v762 = vadd.f32 %v748, %v758
        %s763 = sld [smem:[#allocation7 + $0x27]]
        %v764 = vstv %s763
        %v765 = vmul.f32 %v713, %v764
        %v766 = vmul.f32 %v714, %v764
        %769 = vrot.lane.b32.xlu0 %v765, 124
        %v770 = vpop.permute.xlu0 %769
        %771 = vrot.lane.b32.xlu0 %v766, 124
        %v772 = vpop.permute.xlu0 %771
        %v775 = vadd.f32 %v761, %v770
        %v776 = vadd.f32 %v762, %v772
        %s777 = sld [smem:[#allocation7 + $0x28]]
        %v778 = vstv %s777
        %v779 = vmul.f32 %v713, %v778
        %v780 = vmul.f32 %v714, %v778
        %783 = vrot.lane.b32.xlu0 %v779, 123
        %v784 = vpop.permute.xlu0 %783
        %785 = vrot.lane.b32.xlu0 %v780, 123
        %v786 = vpop.permute.xlu0 %785
        %v789 = vadd.f32 %v775, %v784
        %v790 = vadd.f32 %v776, %v786
        %s791 = sld [smem:[#allocation7 + $0x29]]
        %v792 = vstv %s791
        %v793 = vmul.f32 %v713, %v792
        %v794 = vmul.f32 %v714, %v792
        %797 = vrot.lane.b32.xlu0 %v793, 122
        %v798 = vpop.permute.xlu0 %797
        %799 = vrot.lane.b32.xlu0 %v794, 122
        %v800 = vpop.permute.xlu0 %799
        %v803 = vadd.f32 %v789, %v798
        %v804 = vadd.f32 %v790, %v800
        %v805 = vld [vmem:[#allocation2 + $0x6] sm:$0xff]
        %v806 = vld [vmem:[#allocation2 + $0xe] sm:$0xff]
        %s807 = sld [smem:[#allocation7 + $0x2a]]
        %v808 = vstv %s807
        %v809 = vmul.f32 %v805, %v808
        %v810 = vmul.f32 %v806, %v808
        %v811 = vadd.f32 %v803, %v809
        %v812 = vadd.f32 %v804, %v810
        %s813 = sld [smem:[#allocation7 + $0x2b]]
        %v814 = vstv %s813
        %v815 = vmul.f32 %v805, %v814
        %v816 = vmul.f32 %v806, %v814
        %819 = vrot.lane.b32.xlu0 %v815, 127
        %v820 = vpop.permute.xlu0 %819
        %821 = vrot.lane.b32.xlu0 %v816, 127
        %v822 = vpop.permute.xlu0 %821
        %v825 = vadd.f32 %v811, %v820
        %v826 = vadd.f32 %v812, %v822
        %s827 = sld [smem:[#allocation7 + $0x2c]]
        %v828 = vstv %s827
        %v829 = vmul.f32 %v805, %v828
        %v830 = vmul.f32 %v806, %v828
        %833 = vrot.lane.b32.xlu0 %v829, 126
        %v834 = vpop.permute.xlu0 %833
        %835 = vrot.lane.b32.xlu0 %v830, 126
        %v836 = vpop.permute.xlu0 %835
        %v839 = vadd.f32 %v825, %v834
        %v840 = vadd.f32 %v826, %v836
        %s841 = sld [smem:[#allocation7 + $0x2d]]
        %v842 = vstv %s841
        %v843 = vmul.f32 %v805, %v842
        %v844 = vmul.f32 %v806, %v842
        %847 = vrot.lane.b32.xlu0 %v843, 125
        %v848 = vpop.permute.xlu0 %847
        %849 = vrot.lane.b32.xlu0 %v844, 125
        %v850 = vpop.permute.xlu0 %849
        %v853 = vadd.f32 %v839, %v848
        %v854 = vadd.f32 %v840, %v850
        %s855 = sld [smem:[#allocation7 + $0x2e]]
        %v856 = vstv %s855
        %v857 = vmul.f32 %v805, %v856
        %v858 = vmul.f32 %v806, %v856
        %861 = vrot.lane.b32.xlu0 %v857, 124
        %v862 = vpop.permute.xlu0 %861
        %863 = vrot.lane.b32.xlu0 %v858, 124
        %v864 = vpop.permute.xlu0 %863
        %v867 = vadd.f32 %v853, %v862
        %v868 = vadd.f32 %v854, %v864
        %s869 = sld [smem:[#allocation7 + $0x2f]]
        %v870 = vstv %s869
        %v871 = vmul.f32 %v805, %v870
        %v872 = vmul.f32 %v806, %v870
        %875 = vrot.lane.b32.xlu0 %v871, 123
        %v876 = vpop.permute.xlu0 %875
        %877 = vrot.lane.b32.xlu0 %v872, 123
        %v878 = vpop.permute.xlu0 %877
        %v881 = vadd.f32 %v867, %v876
        %v882 = vadd.f32 %v868, %v878
        %s883 = sld [smem:[#allocation7 + $0x30]]
        %v884 = vstv %s883
        %v885 = vmul.f32 %v805, %v884
        %v886 = vmul.f32 %v806, %v884
        %889 = vrot.lane.b32.xlu0 %v885, 122
        %v890 = vpop.permute.xlu0 %889
        %891 = vrot.lane.b32.xlu0 %v886, 122
        %v892 = vpop.permute.xlu0 %891
        %v895 = vadd.f32 %v881, %v890
        %v896 = vadd.f32 %v882, %v892
        %v897 = vld [vmem:[%s250] sm:$0xff]
        %v898 = vld [vmem:[%s250 + $0x8] sm:$0xff]
        %s899 = sld [smem:[#allocation7 + $0x31]]
        %v900 = vstv %s899
        %v901 = vmul.f32 %v897, %v900
        %v902 = vmul.f32 %v898, %v900
        %v903 = vadd.f32 %v895, %v901
        %v904 = vadd.f32 %v896, %v902
        %s905 = sld [smem:[#allocation7 + $0x32]]
        %v906 = vstv %s905
        %v907 = vmul.f32 %v897, %v906
        %v908 = vmul.f32 %v898, %v906
        %911 = vrot.lane.b32.xlu0 %v907, 127
        %v912 = vpop.permute.xlu0 %911
        %913 = vrot.lane.b32.xlu0 %v908, 127
        %v914 = vpop.permute.xlu0 %913
        %v917 = vadd.f32 %v903, %v912
        %v918 = vadd.f32 %v904, %v914
        %s919 = sld [smem:[#allocation7 + $0x33]]
        %v920 = vstv %s919
        %v921 = vmul.f32 %v897, %v920
        %v922 = vmul.f32 %v898, %v920
        %925 = vrot.lane.b32.xlu0 %v921, 126
        %v926 = vpop.permute.xlu0 %925
        %927 = vrot.lane.b32.xlu0 %v922, 126
        %v928 = vpop.permute.xlu0 %927
        %v931 = vadd.f32 %v917, %v926
        %v932 = vadd.f32 %v918, %v928
        %s933 = sld [smem:[#allocation7 + $0x34]]
        %v934 = vstv %s933
        %v935 = vmul.f32 %v897, %v934
        %v936 = vmul.f32 %v898, %v934
        %939 = vrot.lane.b32.xlu0 %v935, 125
        %v940 = vpop.permute.xlu0 %939
        %941 = vrot.lane.b32.xlu0 %v936, 125
        %v942 = vpop.permute.xlu0 %941
        %v945 = vadd.f32 %v931, %v940
        %v946 = vadd.f32 %v932, %v942
        %s947 = sld [smem:[#allocation7 + $0x35]]
        %v948 = vstv %s947
        %v949 = vmul.f32 %v897, %v948
        %v950 = vmul.f32 %v898, %v948
        %953 = vrot.lane.b32.xlu0 %v949, 124
        %v954 = vpop.permute.xlu0 %953
        %955 = vrot.lane.b32.xlu0 %v950, 124
        %v956 = vpop.permute.xlu0 %955
        %v959 = vadd.f32 %v945, %v954
        %v960 = vadd.f32 %v946, %v956
        %s961 = sld [smem:[#allocation7 + $0x36]]
        %v962 = vstv %s961
        %v963 = vmul.f32 %v897, %v962
        %v964 = vmul.f32 %v898, %v962
        %967 = vrot.lane.b32.xlu0 %v963, 123
        %v968 = vpop.permute.xlu0 %967
        %969 = vrot.lane.b32.xlu0 %v964, 123
        %v970 = vpop.permute.xlu0 %969
        %v973 = vadd.f32 %v959, %v968
        %v974 = vadd.f32 %v960, %v970
        %s975 = sld [smem:[#allocation7 + $0x37]]
        %v976 = vstv %s975
        %v977 = vmul.f32 %v897, %v976
        %v978 = vmul.f32 %v898, %v976
        %981 = vrot.lane.b32.xlu0 %v977, 122
        %v982 = vpop.permute.xlu0 %981
        %983 = vrot.lane.b32.xlu0 %v978, 122
        %v984 = vpop.permute.xlu0 %983
        %v987 = vadd.f32 %v973, %v982
        %v988 = vadd.f32 %v974, %v984
        %v989 = vld [vmem:[%s250 + $0x1] sm:$0xff]
        %v990 = vld [vmem:[%s250 + $0x9] sm:$0xff]
        %s991 = sld [smem:[#allocation7 + $0x38]]
        %v992 = vstv %s991
        %v993 = vmul.f32 %v989, %v992
        %v994 = vmul.f32 %v990, %v992
        %v995 = vadd.f32 %v987, %v993
        %v996 = vadd.f32 %v988, %v994
        %s997 = sld [smem:[#allocation7 + $0x39]]
        %v998 = vstv %s997
        %v999 = vmul.f32 %v989, %v998
        %v1000 = vmul.f32 %v990, %v998
        %1003 = vrot.lane.b32.xlu0 %v999, 127
        %v1004 = vpop.permute.xlu0 %1003
        %1005 = vrot.lane.b32.xlu0 %v1000, 127
        %v1006 = vpop.permute.xlu0 %1005
        %v1009 = vadd.f32 %v995, %v1004
        %v1010 = vadd.f32 %v996, %v1006
        %s1011 = sld [smem:[#allocation7 + $0x3a]]
        %v1012 = vstv %s1011
        %v1013 = vmul.f32 %v989, %v1012
        %v1014 = vmul.f32 %v990, %v1012
        %1017 = vrot.lane.b32.xlu0 %v1013, 126
        %v1018 = vpop.permute.xlu0 %1017
        %1019 = vrot.lane.b32.xlu0 %v1014, 126
        %v1020 = vpop.permute.xlu0 %1019
        %v1023 = vadd.f32 %v1009, %v1018
        %v1024 = vadd.f32 %v1010, %v1020
        %s1025 = sld [smem:[#allocation7 + $0x3b]]
        %v1026 = vstv %s1025
        %v1027 = vmul.f32 %v989, %v1026
        %v1028 = vmul.f32 %v990, %v1026
        %1031 = vrot.lane.b32.xlu0 %v1027, 125
        %v1032 = vpop.permute.xlu0 %1031
        %1033 = vrot.lane.b32.xlu0 %v1028, 125
        %v1034 = vpop.permute.xlu0 %1033
        %v1037 = vadd.f32 %v1023, %v1032
        %v1038 = vadd.f32 %v1024, %v1034
        %s1039 = sld [smem:[#allocation7 + $0x3c]]
        %v1040 = vstv %s1039
        %v1041 = vmul.f32 %v989, %v1040
        %v1042 = vmul.f32 %v990, %v1040
        %1045 = vrot.lane.b32.xlu0 %v1041, 124
        %v1046 = vpop.permute.xlu0 %1045
        %1047 = vrot.lane.b32.xlu0 %v1042, 124
        %v1048 = vpop.permute.xlu0 %1047
        %v1051 = vadd.f32 %v1037, %v1046
        %v1052 = vadd.f32 %v1038, %v1048
        %s1053 = sld [smem:[#allocation7 + $0x3d]]
        %v1054 = vstv %s1053
        %v1055 = vmul.f32 %v989, %v1054
        %v1056 = vmul.f32 %v990, %v1054
        %1059 = vrot.lane.b32.xlu0 %v1055, 123
        %v1060 = vpop.permute.xlu0 %1059
        %1061 = vrot.lane.b32.xlu0 %v1056, 123
        %v1062 = vpop.permute.xlu0 %1061
        %v1065 = vadd.f32 %v1051, %v1060
        %v1066 = vadd.f32 %v1052, %v1062
        %s1067 = sld [smem:[#allocation7 + $0x3e]]
        %v1068 = vstv %s1067
        %v1069 = vmul.f32 %v989, %v1068
        %v1070 = vmul.f32 %v990, %v1068
        %1073 = vrot.lane.b32.xlu0 %v1069, 122
        %v1074 = vpop.permute.xlu0 %1073
        %1075 = vrot.lane.b32.xlu0 %v1070, 122
        %v1076 = vpop.permute.xlu0 %1075
        %v1079 = vadd.f32 %v1065, %v1074
        %v1080 = vadd.f32 %v1066, %v1076
        %v1081 = vld [vmem:[%s250 + $0x2] sm:$0xff]
        %v1082 = vld [vmem:[%s250 + $0xa] sm:$0xff]
        %s1083 = sld [smem:[#allocation7 + $0x3f]]
        %v1084 = vstv %s1083
        %v1085 = vmul.f32 %v1081, %v1084
        %v1086 = vmul.f32 %v1082, %v1084
        %v1087 = vadd.f32 %v1079, %v1085
        %v1088 = vadd.f32 %v1080, %v1086
        %s1089 = sld [smem:[#allocation7 + $0x40]]
        %v1090 = vstv %s1089
        %v1091 = vmul.f32 %v1081, %v1090
        %v1092 = vmul.f32 %v1082, %v1090
        %1095 = vrot.lane.b32.xlu0 %v1091, 127
        %v1096 = vpop.permute.xlu0 %1095
        %1097 = vrot.lane.b32.xlu0 %v1092, 127
        %v1098 = vpop.permute.xlu0 %1097
        %v1101 = vadd.f32 %v1087, %v1096
        %v1102 = vadd.f32 %v1088, %v1098
        %s1103 = sld [smem:[#allocation7 + $0x41]]
        %v1104 = vstv %s1103
        %v1105 = vmul.f32 %v1081, %v1104
        %v1106 = vmul.f32 %v1082, %v1104
        %1109 = vrot.lane.b32.xlu0 %v1105, 126
        %v1110 = vpop.permute.xlu0 %1109
        %1111 = vrot.lane.b32.xlu0 %v1106, 126
        %v1112 = vpop.permute.xlu0 %1111
        %v1115 = vadd.f32 %v1101, %v1110
        %v1116 = vadd.f32 %v1102, %v1112
        %s1117 = sld [smem:[#allocation7 + $0x42]]
        %v1118 = vstv %s1117
        %v1119 = vmul.f32 %v1081, %v1118
        %v1120 = vmul.f32 %v1082, %v1118
        %1123 = vrot.lane.b32.xlu0 %v1119, 125
        %v1124 = vpop.permute.xlu0 %1123
        %1125 = vrot.lane.b32.xlu0 %v1120, 125
        %v1126 = vpop.permute.xlu0 %1125
        %v1129 = vadd.f32 %v1115, %v1124
        %v1130 = vadd.f32 %v1116, %v1126
        %s1131 = sld [smem:[#allocation7 + $0x43]]
        %v1132 = vstv %s1131
        %v1133 = vmul.f32 %v1081, %v1132
        %v1134 = vmul.f32 %v1082, %v1132
        %1137 = vrot.lane.b32.xlu0 %v1133, 124
        %v1138 = vpop.permute.xlu0 %1137
        %1139 = vrot.lane.b32.xlu0 %v1134, 124
        %v1140 = vpop.permute.xlu0 %1139
        %v1143 = vadd.f32 %v1129, %v1138
        %v1144 = vadd.f32 %v1130, %v1140
        %s1145 = sld [smem:[#allocation7 + $0x44]]
        %v1146 = vstv %s1145
        %v1147 = vmul.f32 %v1081, %v1146
        %v1148 = vmul.f32 %v1082, %v1146
        %1151 = vrot.lane.b32.xlu0 %v1147, 123
        %v1152 = vpop.permute.xlu0 %1151
        %1153 = vrot.lane.b32.xlu0 %v1148, 123
        %v1154 = vpop.permute.xlu0 %1153
        %v1157 = vadd.f32 %v1143, %v1152
        %v1158 = vadd.f32 %v1144, %v1154
        %s1159 = sld [smem:[#allocation7 + $0x45]]
        %v1160 = vstv %s1159
        %v1161 = vmul.f32 %v1081, %v1160
        %v1162 = vmul.f32 %v1082, %v1160
        %1165 = vrot.lane.b32.xlu0 %v1161, 122
        %v1166 = vpop.permute.xlu0 %1165
        %1167 = vrot.lane.b32.xlu0 %v1162, 122
        %v1168 = vpop.permute.xlu0 %1167
        %v1171 = vadd.f32 %v1157, %v1166
        %v1172 = vadd.f32 %v1158, %v1168
        %v1173 = vld [vmem:[%s250 + $0x3] sm:$0xff]
        %v1174 = vld [vmem:[%s250 + $0xb] sm:$0xff]
        %s1175 = sld [smem:[#allocation7 + $0x46]]
        %v1176 = vstv %s1175
        %v1177 = vmul.f32 %v1173, %v1176
        %v1178 = vmul.f32 %v1174, %v1176
        %v1179 = vadd.f32 %v1171, %v1177
        %v1180 = vadd.f32 %v1172, %v1178
        %s1181 = sld [smem:[#allocation7 + $0x47]]
        %v1182 = vstv %s1181
        %v1183 = vmul.f32 %v1173, %v1182
        %v1184 = vmul.f32 %v1174, %v1182
        %1187 = vrot.lane.b32.xlu0 %v1183, 127
        %v1188 = vpop.permute.xlu0 %1187
        %1189 = vrot.lane.b32.xlu0 %v1184, 127
        %v1190 = vpop.permute.xlu0 %1189
        %v1193 = vadd.f32 %v1179, %v1188
        %v1194 = vadd.f32 %v1180, %v1190
        %s1195 = sld [smem:[#allocation7 + $0x48]]
        %v1196 = vstv %s1195
        %v1197 = vmul.f32 %v1173, %v1196
        %v1198 = vmul.f32 %v1174, %v1196
        %1201 = vrot.lane.b32.xlu0 %v1197, 126
        %v1202 = vpop.permute.xlu0 %1201
        %1203 = vrot.lane.b32.xlu0 %v1198, 126
        %v1204 = vpop.permute.xlu0 %1203
        %v1207 = vadd.f32 %v1193, %v1202
        %v1208 = vadd.f32 %v1194, %v1204
        %s1209 = sld [smem:[#allocation7 + $0x49]]
        %v1210 = vstv %s1209
        %v1211 = vmul.f32 %v1173, %v1210
        %v1212 = vmul.f32 %v1174, %v1210
        %1215 = vrot.lane.b32.xlu0 %v1211, 125
        %v1216 = vpop.permute.xlu0 %1215
        %1217 = vrot.lane.b32.xlu0 %v1212, 125
        %v1218 = vpop.permute.xlu0 %1217
        %v1221 = vadd.f32 %v1207, %v1216
        %v1222 = vadd.f32 %v1208, %v1218
        %s1223 = sld [smem:[#allocation7 + $0x4a]]
        %v1224 = vstv %s1223
        %v1225 = vmul.f32 %v1173, %v1224
        %v1226 = vmul.f32 %v1174, %v1224
        %1229 = vrot.lane.b32.xlu0 %v1225, 124
        %v1230 = vpop.permute.xlu0 %1229
        %1231 = vrot.lane.b32.xlu0 %v1226, 124
        %v1232 = vpop.permute.xlu0 %1231
        %v1235 = vadd.f32 %v1221, %v1230
        %v1236 = vadd.f32 %v1222, %v1232
        %s1237 = sld [smem:[#allocation7 + $0x4b]]
        %v1238 = vstv %s1237
        %v1239 = vmul.f32 %v1173, %v1238
        %v1240 = vmul.f32 %v1174, %v1238
        %1243 = vrot.lane.b32.xlu0 %v1239, 123
        %v1244 = vpop.permute.xlu0 %1243
        %1245 = vrot.lane.b32.xlu0 %v1240, 123
        %v1246 = vpop.permute.xlu0 %1245
        %v1249 = vadd.f32 %v1235, %v1244
        %v1250 = vadd.f32 %v1236, %v1246
        %s1251 = sld [smem:[#allocation7 + $0x4c]]
        %v1252 = vstv %s1251
        %v1253 = vmul.f32 %v1173, %v1252
        %v1254 = vmul.f32 %v1174, %v1252
        %1257 = vrot.lane.b32.xlu0 %v1253, 122
        %v1258 = vpop.permute.xlu0 %1257
        %1259 = vrot.lane.b32.xlu0 %v1254, 122
        %v1260 = vpop.permute.xlu0 %1259
        %v1263 = vadd.f32 %v1249, %v1258
        %v1264 = vadd.f32 %v1250, %v1260
        %v1265 = vld [vmem:[%s250 + $0x4] sm:$0xff]
        %v1266 = vld [vmem:[%s250 + $0xc] sm:$0xff]
        %s1267 = sld [smem:[#allocation7 + $0x4d]]
        %v1268 = vstv %s1267
        %v1269 = vmul.f32 %v1265, %v1268
        %v1270 = vmul.f32 %v1266, %v1268
        %v1271 = vadd.f32 %v1263, %v1269
        %v1272 = vadd.f32 %v1264, %v1270
        %s1273 = sld [smem:[#allocation7 + $0x4e]]
        %v1274 = vstv %s1273
        %v1275 = vmul.f32 %v1265, %v1274
        %v1276 = vmul.f32 %v1266, %v1274
        %1279 = vrot.lane.b32.xlu0 %v1275, 127
        %v1280 = vpop.permute.xlu0 %1279
        %1281 = vrot.lane.b32.xlu0 %v1276, 127
        %v1282 = vpop.permute.xlu0 %1281
        %v1285 = vadd.f32 %v1271, %v1280
        %v1286 = vadd.f32 %v1272, %v1282
        %s1287 = sld [smem:[#allocation7 + $0x4f]]
        %v1288 = vstv %s1287
        %v1289 = vmul.f32 %v1265, %v1288
        %v1290 = vmul.f32 %v1266, %v1288
        %1293 = vrot.lane.b32.xlu0 %v1289, 126
        %v1294 = vpop.permute.xlu0 %1293
        %1295 = vrot.lane.b32.xlu0 %v1290, 126
        %v1296 = vpop.permute.xlu0 %1295
        %v1299 = vadd.f32 %v1285, %v1294
        %v1300 = vadd.f32 %v1286, %v1296
        %s1301 = sld [smem:[#allocation7 + $0x50]]
        %v1302 = vstv %s1301
        %v1303 = vmul.f32 %v1265, %v1302
        %v1304 = vmul.f32 %v1266, %v1302
        %1307 = vrot.lane.b32.xlu0 %v1303, 125
        %v1308 = vpop.permute.xlu0 %1307
        %1309 = vrot.lane.b32.xlu0 %v1304, 125
        %v1310 = vpop.permute.xlu0 %1309
        %v1313 = vadd.f32 %v1299, %v1308
        %v1314 = vadd.f32 %v1300, %v1310
        %s1315 = sld [smem:[#allocation7 + $0x51]]
        %v1316 = vstv %s1315
        %v1317 = vmul.f32 %v1265, %v1316
        %v1318 = vmul.f32 %v1266, %v1316
        %1321 = vrot.lane.b32.xlu0 %v1317, 124
        %v1322 = vpop.permute.xlu0 %1321
        %1323 = vrot.lane.b32.xlu0 %v1318, 124
        %v1324 = vpop.permute.xlu0 %1323
        %v1327 = vadd.f32 %v1313, %v1322
        %v1328 = vadd.f32 %v1314, %v1324
        %s1329 = sld [smem:[#allocation7 + $0x52]]
        %v1330 = vstv %s1329
        %v1331 = vmul.f32 %v1265, %v1330
        %v1332 = vmul.f32 %v1266, %v1330
        %1335 = vrot.lane.b32.xlu0 %v1331, 123
        %v1336 = vpop.permute.xlu0 %1335
        %1337 = vrot.lane.b32.xlu0 %v1332, 123
        %v1338 = vpop.permute.xlu0 %1337
        %v1341 = vadd.f32 %v1327, %v1336
        %v1342 = vadd.f32 %v1328, %v1338
        %s1343 = sld [smem:[#allocation7 + $0x53]]
        %v1344 = vstv %s1343
        %v1345 = vmul.f32 %v1265, %v1344
        %v1346 = vmul.f32 %v1266, %v1344
        %1349 = vrot.lane.b32.xlu0 %v1345, 122
        %v1350 = vpop.permute.xlu0 %1349
        %1351 = vrot.lane.b32.xlu0 %v1346, 122
        %v1352 = vpop.permute.xlu0 %1351
        %v1355 = vadd.f32 %v1341, %v1350
        %v1356 = vadd.f32 %v1342, %v1352
        %v1357 = vld [vmem:[%s250 + $0x5] sm:$0xff]
        %v1358 = vld [vmem:[%s250 + $0xd] sm:$0xff]
        %s1359 = sld [smem:[#allocation7 + $0x54]]
        %v1360 = vstv %s1359
        %v1361 = vmul.f32 %v1357, %v1360
        %v1362 = vmul.f32 %v1358, %v1360
        %v1363 = vadd.f32 %v1355, %v1361
        %v1364 = vadd.f32 %v1356, %v1362
        %s1365 = sld [smem:[#allocation7 + $0x55]]
        %v1366 = vstv %s1365
        %v1367 = vmul.f32 %v1357, %v1366
        %v1368 = vmul.f32 %v1358, %v1366
        %1371 = vrot.lane.b32.xlu0 %v1367, 127
        %v1372 = vpop.permute.xlu0 %1371
        %1373 = vrot.lane.b32.xlu0 %v1368, 127
        %v1374 = vpop.permute.xlu0 %1373
        %v1377 = vadd.f32 %v1363, %v1372
        %v1378 = vadd.f32 %v1364, %v1374
        %s1379 = sld [smem:[#allocation7 + $0x56]]
        %v1380 = vstv %s1379
        %v1381 = vmul.f32 %v1357, %v1380
        %v1382 = vmul.f32 %v1358, %v1380
        %1385 = vrot.lane.b32.xlu0 %v1381, 126
        %v1386 = vpop.permute.xlu0 %1385
        %1387 = vrot.lane.b32.xlu0 %v1382, 126
        %v1388 = vpop.permute.xlu0 %1387
        %v1391 = vadd.f32 %v1377, %v1386
        %v1392 = vadd.f32 %v1378, %v1388
        %s1393 = sld [smem:[#allocation7 + $0x57]]
        %v1394 = vstv %s1393
        %v1395 = vmul.f32 %v1357, %v1394
        %v1396 = vmul.f32 %v1358, %v1394
        %1399 = vrot.lane.b32.xlu0 %v1395, 125
        %v1400 = vpop.permute.xlu0 %1399
        %1401 = vrot.lane.b32.xlu0 %v1396, 125
        %v1402 = vpop.permute.xlu0 %1401
        %v1405 = vadd.f32 %v1391, %v1400
        %v1406 = vadd.f32 %v1392, %v1402
        %s1407 = sld [smem:[#allocation7 + $0x58]]
        %v1408 = vstv %s1407
        %v1409 = vmul.f32 %v1357, %v1408
        %v1410 = vmul.f32 %v1358, %v1408
        %1413 = vrot.lane.b32.xlu0 %v1409, 124
        %v1414 = vpop.permute.xlu0 %1413
        %1415 = vrot.lane.b32.xlu0 %v1410, 124
        %v1416 = vpop.permute.xlu0 %1415
        %v1419 = vadd.f32 %v1405, %v1414
        %v1420 = vadd.f32 %v1406, %v1416
        %s1421 = sld [smem:[#allocation7 + $0x59]]
        %v1422 = vstv %s1421
        %v1423 = vmul.f32 %v1357, %v1422
        %v1424 = vmul.f32 %v1358, %v1422
        %1427 = vrot.lane.b32.xlu0 %v1423, 123
        %v1428 = vpop.permute.xlu0 %1427
        %1429 = vrot.lane.b32.xlu0 %v1424, 123
        %v1430 = vpop.permute.xlu0 %1429
        %v1433 = vadd.f32 %v1419, %v1428
        %v1434 = vadd.f32 %v1420, %v1430
        %s1435 = sld [smem:[#allocation7 + $0x5a]]
        %v1436 = vstv %s1435
        %v1437 = vmul.f32 %v1357, %v1436
        %v1438 = vmul.f32 %v1358, %v1436
        %1441 = vrot.lane.b32.xlu0 %v1437, 122
        %v1442 = vpop.permute.xlu0 %1441
        %1443 = vrot.lane.b32.xlu0 %v1438, 122
        %v1444 = vpop.permute.xlu0 %1443
        %v1447 = vadd.f32 %v1433, %v1442
        %v1448 = vadd.f32 %v1434, %v1444
        %v1449 = vld [vmem:[%s250 + $0x6] sm:$0xff]
        %v1450 = vld [vmem:[%s250 + $0xe] sm:$0xff]
        %s1451 = sld [smem:[#allocation7 + $0x5b]]
        %v1452 = vstv %s1451
        %v1453 = vmul.f32 %v1449, %v1452
        %v1454 = vmul.f32 %v1450, %v1452
        %v1455 = vadd.f32 %v1447, %v1453
        %v1456 = vadd.f32 %v1448, %v1454
        %s1457 = sld [smem:[#allocation7 + $0x5c]]
        %v1458 = vstv %s1457
        %v1459 = vmul.f32 %v1449, %v1458
        %v1460 = vmul.f32 %v1450, %v1458
        %1463 = vrot.lane.b32.xlu0 %v1459, 127
        %v1464 = vpop.permute.xlu0 %1463
        %1465 = vrot.lane.b32.xlu0 %v1460, 127
        %v1466 = vpop.permute.xlu0 %1465
        %v1469 = vadd.f32 %v1455, %v1464
        %v1470 = vadd.f32 %v1456, %v1466
        %s1471 = sld [smem:[#allocation7 + $0x5d]]
        %v1472 = vstv %s1471
        %v1473 = vmul.f32 %v1449, %v1472
        %v1474 = vmul.f32 %v1450, %v1472
        %1477 = vrot.lane.b32.xlu0 %v1473, 126
        %v1478 = vpop.permute.xlu0 %1477
        %1479 = vrot.lane.b32.xlu0 %v1474, 126
        %v1480 = vpop.permute.xlu0 %1479
        %v1483 = vadd.f32 %v1469, %v1478
        %v1484 = vadd.f32 %v1470, %v1480
        %s1485 = sld [smem:[#allocation7 + $0x5e]]
        %v1486 = vstv %s1485
        %v1487 = vmul.f32 %v1449, %v1486
        %v1488 = vmul.f32 %v1450, %v1486
        %1491 = vrot.lane.b32.xlu0 %v1487, 125
        %v1492 = vpop.permute.xlu0 %1491
        %1493 = vrot.lane.b32.xlu0 %v1488, 125
        %v1494 = vpop.permute.xlu0 %1493
        %v1497 = vadd.f32 %v1483, %v1492
        %v1498 = vadd.f32 %v1484, %v1494
        %s1499 = sld [smem:[#allocation7 + $0x5f]]
        %v1500 = vstv %s1499
        %v1501 = vmul.f32 %v1449, %v1500
        %v1502 = vmul.f32 %v1450, %v1500
        %1505 = vrot.lane.b32.xlu0 %v1501, 124
        %v1506 = vpop.permute.xlu0 %1505
        %1507 = vrot.lane.b32.xlu0 %v1502, 124
        %v1508 = vpop.permute.xlu0 %1507
        %v1511 = vadd.f32 %v1497, %v1506
        %v1512 = vadd.f32 %v1498, %v1508
        %s1513 = sld [smem:[#allocation7 + $0x60]]
        %v1514 = vstv %s1513
        %v1515 = vmul.f32 %v1449, %v1514
        %v1516 = vmul.f32 %v1450, %v1514
        %1519 = vrot.lane.b32.xlu0 %v1515, 123
        %v1520 = vpop.permute.xlu0 %1519
        %1521 = vrot.lane.b32.xlu0 %v1516, 123
        %v1522 = vpop.permute.xlu0 %1521
        %v1525 = vadd.f32 %v1511, %v1520
        %v1526 = vadd.f32 %v1512, %v1522
        %s1527 = sld [smem:[#allocation7 + $0x61]]
        %v1528 = vstv %s1527
        %v1529 = vmul.f32 %v1449, %v1528
        %v1530 = vmul.f32 %v1450, %v1528
        %1533 = vrot.lane.b32.xlu0 %v1529, 122
        %v1534 = vpop.permute.xlu0 %1533
        %1535 = vrot.lane.b32.xlu0 %v1530, 122
        %v1536 = vpop.permute.xlu0 %1535
        %v1539 = vadd.f32 %v1525, %v1534
        %v1540 = vadd.f32 %v1526, %v1536
        %v1541 = vxor.u32 %v1539, 2147483648
        %v1542 = vxor.u32 %v1540, 2147483648
        %v1543 = vmul.f32 %v1541, 1.442695
        %v1544 = vpow.pop %v1543
        %v1545 = vmul.f32 %v1542, 1.442695
        %v1546 = vpow.pop %v1545
        %v1547 = vadd.f32 %v1544, 1.0
        %v1548 = vadd.f32 %v1546, 1.0
        %v1549 = vrcp.pop %v1547
        %v1550 = vmul.f32 1.0, %v1549
        %v1551 = vrcp.pop %v1548
        %v1552 = vmul.f32 1.0, %v1551
        %1553 = vst.msk [vmem:[%s175] sm:$0xff] %vm184, %v1550
        %1554 = vst.msk [vmem:[%s175 + $0x8] sm:$0xff] %vm184, %v1552
        %s1555 = sand.u32 %s75, 1
        %s1556 = scalar_lea.sflag [#allocation5], %s1555
        %s1557 = sand.u32 %s75, 1
        %s1558 = smul.addr %s1557, 16
        %s1559 = scalar_lea.vmem [#allocation8], %s1558
        // Predicated region
        $region37: #{tpu_custom_call.1} parent=27 // pred_check
          %p1560 = pneg %p85
        $region38: #{tpu_custom_call.1} parent=27 // pred_check_branch
          %1562 = sbr.rel (%p1560) target = $region40
        $region39: #{tpu_custom_call.1} parent=27 // pred_region
          %s1564 = ssub.s32 256, 256
          %1565 = vsyncadd %s1556, %s1564
          %s1566 = smul.addr %s20, 2
          %s1567 = smul.addr %s1566, 128
          %s1568 = scalar_lea.hbm %s2, %s1567
          %s1569 = sshll.u32 %s1559, 4
          %s1570 = int_to_ptr.vmem [resolvable:$true] %s1569
          %1575 = dma.vmem_to_hbm [thread:$0]  %s1570, 256, %s1568, %s1556, 128, 128, 8
        $region40: #{tpu_custom_call.1} parent=27 // pred_fallthru
          _
      $region28: #{tpu_custom_call.1} parent=5 // pred_fallthru
        _
      %p1576 = scmp.le.s32.totalorder 2, %s15
      // Predicated region
      $region41: #{tpu_custom_call.1} parent=5 // pred_check
        %p1577 = pneg %p1576
      $region42: #{tpu_custom_call.1} parent=5 // pred_check_branch
        %1579 = sbr.rel (%p1577) target = $region44
      $region43: #{tpu_custom_call.1} parent=5 // pred_region
        %s1580 = ssub.s32 %s15, 2
        // Predicated region
        $region45: #{tpu_custom_call.1} parent=43 // pred_check
          %p1581 = pneg %p91
        $region46: #{tpu_custom_call.1} parent=43 // pred_check_branch
          %1583 = sbr.rel (%p1581) target = $region48
        $region47: #{tpu_custom_call.1} parent=43 // pred_region
          %s1584 = sand.u32 %s76, 1
          %s1585 = scalar_lea.sflag [#allocation5], %s1584
          %s1586 = sand.u32 %s76, 1
          %s1587 = smul.addr %s1586, 16
          %s1588 = scalar_lea.vmem [#allocation8], %s1587
          %1589 = dma.done %s1585, 256
        $region48: #{tpu_custom_call.1} parent=43 // pred_fallthru
          _
      $region44: #{tpu_custom_call.1} parent=5 // pred_fallthru
        _
    $region6: #{tpu_custom_call.1} parent=1 // loop_footer
      %s19 = sadd.s32 1, %s15
    $region7: #{tpu_custom_call.1} parent=1 // loop_footer_branch
      %14 = sbr.rel target = $region3
    $region8: #{tpu_custom_call.1} parent=1 // loop_exit
      _
    %1590 = vsyncpa [#allocation4], 1
    %s1591 = scalar_lea.sflag [#allocation4], 1
    %1592 = vsyncpa %s1591, 1
    %1593 = vsyncpa [#allocation5], 1
    %s1594 = scalar_lea.sflag [#allocation5], 1
    %1595 = vsyncpa %s1594, 1
    %1596 = vsyncpa [#allocation6], 1
    %s1597 = scalar_lea.sflag [#allocation6], 1
    %1598 = vsyncpa %s1597, 1

</llo_original>
